<compile_context>
chip_gen: v6e
topology: v6e:2x2x1
jax: 0.10.0
libtpu: 0.0.40
codegen_flags: <defaults>
</compile_context>

<pallas_src>
import jax
import jax.numpy as jnp
import numpy as np
from jax.experimental import pallas as pl
from jax.experimental.pallas import tpu as pltpu


def _round_up(v, m):
    return ((v + m - 1) // m) * m


def _device_kind():
    try:
        return jax.devices()[0].device_kind.lower()
    except Exception:
        return ""


def _kv_block_spec(block_shape, index_map):
    """K/V block index is constant per batch element: single-buffer it.

    An unchanged block is not re-fetched by the pipeline, so Buffered(1) only
    saves VMEM (no extra DMA).  Fall back to the default spec on older JAX.
    """
    try:
        return pl.BlockSpec(block_shape, index_map, pipeline_mode=pl.Buffered(1))
    except (TypeError, AttributeError):
        return pl.BlockSpec(block_shape, index_map)


def _make_self_attn_kernel(return_attention, masked, mm_dtype, exp_dtype):
    """Kernel body for one (batch, query-tile) grid point."""

    def _body(q_ref, k_ref, v_ref, x_ref, mask_ref, gamma_ref, out_ref, attn_ref):
        # energy[i, j] = q_i . k_j  (contraction over channels; no transpose)
        energy = jax.lax.dot_general(
            q_ref[...], k_ref[...],
            dimension_numbers=(((1,), (1,)), ((), ())),
            preferred_element_type=jnp.float32)                  # (TQ, NP) f32

        if masked:
            # additive {0, -1e30} bias row (precomputed in the wrapper)
            energy = energy + mask_ref[...]

        # numerically stable softmax; statistics stay in f32
        m = jnp.max(energy, axis=-1, keepdims=True)
        e = jnp.exp((energy - m).astype(exp_dtype))
        denom = jnp.sum(e, axis=-1, keepdims=True, dtype=jnp.float32)   # (TQ, 1)

        if return_attention:
            # Exact normalization: the approximate reciprocal is not accurate
            # enough for the returned attention map.
            attn = e.astype(jnp.float32) / denom
            attn_ref[...] = attn.astype(attn_ref.dtype)
            ctx = jnp.dot(attn.astype(mm_dtype), v_ref[...],
                          preferred_element_type=jnp.float32)    # (TQ, CP)
        else:
            # Fast path: normalize AFTER the PV matmul — the scaling touches a
            # (TQ, CP) tile instead of (TQ, NP), and no attn temporary exists.
            ctx = jnp.dot(e.astype(mm_dtype), v_ref[...],
                          preferred_element_type=jnp.float32)    # (TQ, CP)
            ctx = ctx * (1.0 / denom)

        out_ref[...] = gamma_ref[0] * ctx + x_ref[...]

    if return_attention:
        def kernel(q_ref, k_ref, v_ref, x_ref, mask_ref, gamma_ref,
                   out_ref, attn_ref):
            _body(q_ref, k_ref, v_ref, x_ref, mask_ref, gamma_ref,
                  out_ref, attn_ref)
    else:
        def kernel(q_ref, k_ref, v_ref, x_ref, mask_ref, gamma_ref, out_ref):
            _body(q_ref, k_ref, v_ref, x_ref, mask_ref, gamma_ref,
                  out_ref, None)
    return kernel


def self_attn_forward(x, params, *, return_attention=True, matmul_dtype=None,
                      attn_dtype=jnp.float32, tile_q=None):
    """x: (B, C, D, H, W) float32.

    Returns (out, attention) if return_attention else out, matching the
    PyTorch Self_Attn.forward semantics.
    """
    B, C, D, H, W = x.shape
    N = D * H * W
    Cq = params["wq"].shape[0]

    CP = _round_up(C, 128)
    CqP = _round_up(Cq, 128)
    NP = _round_up(N, 128)

    kind = _device_kind()
    is_v5 = "v5" in kind
    older_gen = ("v5" in kind) or ("v6" in kind)            # 128 MiB VMEM parts
    vmem_budget = (100 if older_gen else 48) * 1024 * 1024  # headroom on v7x (64 MiB)

    # bf16 MXU operands roughly double matmul throughput on v5e/v6e/v7x; f32
    # is an opt-in bit-accuracy mode.  Softmax stats / residual are always f32.
    mm_dtype = jnp.dtype(jnp.bfloat16 if matmul_dtype is None else matmul_dtype)
    exp_dtype = (mm_dtype if (mm_dtype == jnp.dtype(jnp.bfloat16) and not is_v5)
                 else jnp.dtype(jnp.float32))
    itm = mm_dtype.itemsize
    attn_itm = jnp.dtype(attn_dtype).itemsize

    def _vmem_usage(tq):
        kv = NP * (CqP + CP) * itm                          # resident K + V
        tiles = 2 * tq * (CqP * itm + 2 * CP * 4)           # q / x / out blocks
        attnb = 2 * tq * NP * attn_itm if return_attention else 0
        temps = 4 * tq * NP * 4                             # energy / exp temps
        return kv + tiles + attnb + temps

    if tile_q is None:
        cands = (512, 256, 128) if older_gen else (256, 128)
        TQ = 128
        for c in cands:
            if NP % c == 0 and _vmem_usage(c) <= 0.9 * vmem_budget:
                TQ = c
                break
    else:
        TQ = tile_q
    assert NP % TQ == 0
    num_q = NP // TQ

    f32 = jnp.float32
    # (B, C, D, H, W) -> (B, N, C), same row-major (d, h, w) order as torch .view
    x_flat = jnp.transpose(x, (0, 2, 3, 4, 1)).reshape(B, N, C).astype(f32)

    # QKV 1x1x1-conv projections hoisted to XLA (attention dominates FLOPs for
    # N >> C); K/V/Q handed to the kernel already cast to matmul_dtype.
    q_un = jnp.einsum("bnc,qc->bnq", x_flat, params["wq"].astype(f32)) + params["bq"].astype(f32)
    k_un = jnp.einsum("bnc,qc->bnq", x_flat, params["wk"].astype(f32)) + params["bk"].astype(f32)
    v_un = jnp.einsum("bnc,oc->bno", x_flat, params["wv"].astype(f32)) + params["bv"].astype(f32)

    q = jnp.pad(q_un, ((0, 0), (0, NP - N), (0, CqP - Cq))).astype(mm_dtype)
    k = jnp.pad(k_un, ((0, 0), (0, NP - N), (0, CqP - Cq))).astype(mm_dtype)
    v = jnp.pad(v_un, ((0, 0), (0, NP - N), (0, CP - C))).astype(mm_dtype)
    x_res = jnp.pad(x_flat, ((0, 0), (0, NP - N), (0, CP - C)))

    # Additive key-padding bias row (replaces per-tile iota + compare + select).
    mask_row = jnp.where(jnp.arange(NP) < N, 0.0, -1e30).astype(f32).reshape(1, NP)
    gamma = params["gamma"].astype(f32).reshape(1)

    kernel = _make_self_attn_kernel(return_attention, NP > N, mm_dtype, exp_dtype)

    in_specs = [
        pl.BlockSpec((None, TQ, CqP), lambda b, qi: (b, qi, 0)),    # q tile
        _kv_block_spec((None, NP, CqP), lambda b, qi: (b, 0, 0)),   # K (resident per b)
        _kv_block_spec((None, NP, CP), lambda b, qi: (b, 0, 0)),    # V (resident per b)
        pl.BlockSpec((None, TQ, CP), lambda b, qi: (b, qi, 0)),     # x residual tile
        pl.BlockSpec((1, NP), lambda b, qi: (0, 0)),                # mask bias row
        pl.BlockSpec(memory_space=pltpu.MemorySpace.SMEM),          # gamma scalar
    ]

    out_spec_o = pl.BlockSpec((None, TQ, CP), lambda b, qi: (b, qi, 0))
    out_shape_o = jax.ShapeDtypeStruct((B, NP, CP), f32)
    if return_attention:
        out_shape = (out_shape_o,
                     jax.ShapeDtypeStruct((B, NP, NP), jnp.dtype(attn_dtype)))
        out_specs = (out_spec_o,
                     pl.BlockSpec((None, TQ, NP), lambda b, qi: (b, qi, 0)))
    else:
        out_shape = out_shape_o
        out_specs = out_spec_o

    attn_bytes = B * NP * NP * attn_itm if return_attention else 0
    cost = pl.CostEstimate(
        flops=2 * B * NP * NP * (CqP + CP),
        transcendentals=B * NP * NP,
        bytes_accessed=(q.size + k.size + v.size) * itm
                       + 2 * B * NP * CP * 4 + attn_bytes)

    result = pl.pallas_call(
        kernel,
        out_shape=out_shape,
        grid=(B, num_q),
        in_specs=in_specs,
        out_specs=out_specs,
        compiler_params=pltpu.CompilerParams(
            # No cross-tile state left in the kernel: both grid axes are
            # independent (v7x megacore works even at B == 1).
            dimension_semantics=("parallel", "parallel"),
            vmem_limit_bytes=vmem_budget,
        ),
        cost_estimate=cost,
    )(q, k, v, x_res, mask_row, gamma)

    if return_attention:
        out_pad, attn_pad = result
    else:
        out_pad = result

    out = jnp.transpose(out_pad[:, :N, :C].reshape(B, D, H, W, C),
                        (0, 4, 1, 2, 3))
    if return_attention:
        return out, attn_pad[:, :N, :N]
    return out


def _reference(x, params):
    """Pure-JAX reference mirroring the PyTorch forward, for verification."""
    B, C, D, H, W = x.shape
    N = D * H * W
    xf = x.reshape(B, C, N)
    q = jnp.einsum("oc,bcn->bon", params["wq"], xf) + params["bq"][None, :, None]
    k = jnp.einsum("oc,bcn->bon", params["wk"], xf) + params["bk"][None, :, None]
    v = jnp.einsum("oc,bcn->bon", params["wv"], xf) + params["bv"][None, :, None]
    energy = jnp.einsum("bqn,bqm->bnm", q, k)
    attn = jax.nn.softmax(energy, axis=-1)
    out = jnp.einsum("bcn,bmn->bcm", v, attn)
    out = out.reshape(B, C, D, H, W)
    out = params["gamma"][0] * out + x
    return out, attn


def _make_params(key, C):
    Cq = max(C // 8, 1)
    kq, kk, kv, kbq, kbk, kbv = jax.random.split(key, 6)
    return {
        "wq": 0.1 * jax.random.normal(kq, (Cq, C), dtype=jnp.float32),
        "bq": 0.1 * jax.random.normal(kbq, (Cq,), dtype=jnp.float32),
        "wk": 0.1 * jax.random.normal(kk, (Cq, C), dtype=jnp.float32),
        "bk": 0.1 * jax.random.normal(kbk, (Cq,), dtype=jnp.float32),
        "wv": 0.1 * jax.random.normal(kv, (C, C), dtype=jnp.float32),
        "bv": 0.1 * jax.random.normal(kbv, (C,), dtype=jnp.float32),
        # PyTorch inits gamma = 0; use a nonzero value so the residual path
        # and gamma scaling are actually exercised.
        "gamma": jnp.array([0.5], dtype=jnp.float32),
    }


if __name__ == "__main__":
    key = jax.random.PRNGKey(0)
    kA, kB, kp = jax.random.split(key, 3)

    # ---- Test A: N = 6*8*8 = 384 (multiple of 128 -> 3 query tiles of 128)
    B, C, D, H, W = 2, 16, 6, 8, 8
    params = _make_params(kp, C)
    xA = jax.random.normal(kA, (B, C, D, H, W), dtype=jnp.float32)
    refA_out, refA_attn = _reference(xA, params)

    outA, attnA = self_attn_forward(xA, params, matmul_dtype=jnp.float32)
    outA, attnA = jax.block_until_ready((outA, attnA))
    assert np.allclose(np.asarray(outA), np.asarray(refA_out),
                       rtol=2e-3, atol=2e-3)
    assert np.allclose(np.asarray(attnA), np.asarray(refA_attn),
                       rtol=2e-3, atol=1e-5)

    # ---- Test B: N = 3*4*5 = 60 (padding -> additive key mask, exact softmax)
    xB = jax.random.normal(kB, (1, C, 3, 4, 5), dtype=jnp.float32)
    refB_out, refB_attn = _reference(xB, params)
    outB, attnB = self_attn_forward(xB, params, matmul_dtype=jnp.float32)
    outB, attnB = jax.block_until_ready((outB, attnB))
    assert np.allclose(np.asarray(outB), np.asarray(refB_out),
                       rtol=2e-3, atol=2e-3)
    assert np.allclose(np.asarray(attnB), np.asarray(refB_attn),
                       rtol=2e-3, atol=1e-5)

    # ---- Test C: attention writeback elided (fast path, post-matmul scaling)
    outC = self_attn_forward(xA, params, return_attention=False,
                             matmul_dtype=jnp.float32)
    outC = jax.block_until_ready(outC)
    assert np.allclose(np.asarray(outC), np.asarray(refA_out),
                       rtol=2e-3, atol=2e-3)

    # ---- Test D: default path (bf16 MXU operands), loose tolerance
    outD, attnD = self_attn_forward(xA, params)
    outD, attnD = jax.block_until_ready((outD, attnD))
    assert np.all(np.isfinite(np.asarray(outD)))
    assert np.all(np.isfinite(np.asarray(attnD)))
    assert np.allclose(np.asarray(outD), np.asarray(refA_out),
                       rtol=1e-1, atol=1e-1)

    print("KERNEL_OK")
</pallas_src>

<mosaic_0001>
module attributes {stable_mosaic.version = 11 : i64} {
  func.func @kernel(%arg0: i32, %arg1: i32, %arg2: memref<1x128x128xf32, #tpu.memory_space<vmem>>, %arg3: memref<1x384x128xf32, #tpu.memory_space<vmem>>, %arg4: memref<1x384x128xf32, #tpu.memory_space<vmem>>, %arg5: memref<1x128x128xf32, #tpu.memory_space<vmem>>, %arg6: memref<1x384xf32, #tpu.memory_space<vmem>>, %arg7: memref<1xf32, #tpu.memory_space<smem>>, %arg8: memref<1x128x128xf32, #tpu.memory_space<vmem>>, %arg9: memref<1x128x384xf32, #tpu.memory_space<vmem>>) attributes {dimension_semantics = [#tpu.dimension_semantics<parallel>, #tpu.dimension_semantics<parallel>], iteration_bounds = array<i64: 2, 3>, scalar_prefetch = 0 : i64, scratch_operands = 0 : i64, tpu.core_type = #tpu.core_type<tc>, window_params = [{transform_indices = @transform_0, window_bounds = array<i64: 1, 128, 128>}, {pipeline_mode = #tpu.pipeline_mode<synchronous>, transform_indices = @transform_1, window_bounds = array<i64: 1, 384, 128>}, {pipeline_mode = #tpu.pipeline_mode<synchronous>, transform_indices = @transform_2, window_bounds = array<i64: 1, 384, 128>}, {transform_indices = @transform_3, window_bounds = array<i64: 1, 128, 128>}, {pipeline_mode = #tpu.pipeline_mode<synchronous>, transform_indices = @transform_4, window_bounds = array<i64: 1, 384>}, {transform_indices = @transform_5, window_bounds = array<i64: 1>}, {transform_indices = @transform_6, window_bounds = array<i64: 1, 128, 128>}, {transform_indices = @transform_7, window_bounds = array<i64: 1, 128, 384>}]} {
    %c0 = arith.constant 0 : index
    %c0_0 = arith.constant 0 : index
    %c0_1 = arith.constant 0 : index
    %0 = vector.load %arg2[%c0, %c0_0, %c0_1] : memref<1x128x128xf32, #tpu.memory_space<vmem>>, vector<1x128x128xf32>
    %1 = vector.shape_cast %0 : vector<1x128x128xf32> to vector<128x128xf32>
    %c0_2 = arith.constant 0 : index
    %c0_3 = arith.constant 0 : index
    %c0_4 = arith.constant 0 : index
    %2 = vector.load %arg3[%c0_2, %c0_3, %c0_4] : memref<1x384x128xf32, #tpu.memory_space<vmem>>, vector<1x384x128xf32>
    %3 = vector.shape_cast %2 : vector<1x384x128xf32> to vector<384x128xf32>
    %cst = arith.constant dense<0.000000e+00> : vector<128x384xf32>
    %4 = tpu.matmul %1, %3, %cst {dimension_numbers = #tpu.dot_dimension_numbers<[1], [1], [0], [0], [0, 0, 1, 0], [], []>} : vector<128x128xf32>, vector<384x128xf32>, vector<128x384xf32> -> vector<128x384xf32>
    %cst_5 = arith.constant dense<0xFF800000> : vector<128xf32>
    %5 = vector.multi_reduction <maximumf>, %4, %cst_5 [1] : vector<128x384xf32> to vector<128xf32>
    %6 = vector.shape_cast %5 : vector<128xf32> to vector<128x1xf32>
    %7 = vector.broadcast %6 : vector<128x1xf32> to vector<128x384xf32>
    %8 = arith.subf %4, %7 : vector<128x384xf32>
    %9 = math.exp %8 : vector<128x384xf32>
    %cst_6 = arith.constant dense<0.000000e+00> : vector<128xf32>
    %10 = vector.multi_reduction <add>, %9, %cst_6 [1] : vector<128x384xf32> to vector<128xf32>
    %11 = vector.shape_cast %10 : vector<128xf32> to vector<128x1xf32>
    %12 = vector.broadcast %11 : vector<128x1xf32> to vector<128x384xf32>
    %13 = arith.divf %9, %12 : vector<128x384xf32>
    %c0_7 = arith.constant 0 : index
    %c0_8 = arith.constant 0 : index
    %c0_9 = arith.constant 0 : index
    %14 = vector.load %arg9[%c0_7, %c0_8, %c0_9] : memref<1x128x384xf32, #tpu.memory_space<vmem>>, vector<1x128x384xf32>
    %15 = vector.shape_cast %14 : vector<1x128x384xf32> to vector<128x384xf32>
    %16 = vector.shape_cast %13 : vector<128x384xf32> to vector<1x128x384xf32>
    tpu.vector_store %arg9[%c0_7, %c0_8, %c0_9], %16 {strides = array<i32>} : memref<1x128x384xf32, #tpu.memory_space<vmem>>, vector<1x128x384xf32>,
    %c0_10 = arith.constant 0 : index
    %c0_11 = arith.constant 0 : index
    %c0_12 = arith.constant 0 : index
    %17 = vector.load %arg4[%c0_10, %c0_11, %c0_12] : memref<1x384x128xf32, #tpu.memory_space<vmem>>, vector<1x384x128xf32>
    %18 = vector.shape_cast %17 : vector<1x384x128xf32> to vector<384x128xf32>
    %cst_13 = arith.constant dense<0.000000e+00> : vector<128x128xf32>
    %19 = tpu.matmul %13, %18, %cst_13 {dimension_numbers = #tpu.dot_dimension_numbers<[1], [0], [0], [1], [0, 0, 1, 1], [], []>} : vector<128x384xf32>, vector<384x128xf32>, vector<128x128xf32> -> vector<128x128xf32>
    %c0_14 = arith.constant 0 : index
    %20 = memref.load %arg7[%c0_14] : memref<1xf32, #tpu.memory_space<smem>>
    %21 = vector.broadcast %20 : f32 to vector<128x128xf32>
    %22 = arith.mulf %21, %19 : vector<128x128xf32>
    %c0_15 = arith.constant 0 : index
    %c0_16 = arith.constant 0 : index
    %c0_17 = arith.constant 0 : index
    %23 = vector.load %arg5[%c0_15, %c0_16, %c0_17] : memref<1x128x128xf32, #tpu.memory_space<vmem>>, vector<1x128x128xf32>
    %24 = vector.shape_cast %23 : vector<1x128x128xf32> to vector<128x128xf32>
    %25 = arith.addf %22, %24 : vector<128x128xf32>
    %c0_18 = arith.constant 0 : index
    %c0_19 = arith.constant 0 : index
    %c0_20 = arith.constant 0 : index
    %26 = vector.load %arg8[%c0_18, %c0_19, %c0_20] : memref<1x128x128xf32, #tpu.memory_space<vmem>>, vector<1x128x128xf32>
    %27 = vector.shape_cast %26 : vector<1x128x128xf32> to vector<128x128xf32>
    %28 = vector.shape_cast %25 : vector<128x128xf32> to vector<1x128x128xf32>
    tpu.vector_store %arg8[%c0_18, %c0_19, %c0_20], %28 {strides = array<i32>} : memref<1x128x128xf32, #tpu.memory_space<vmem>>, vector<1x128x128xf32>,
    return
  }
  func.func @transform_0(%arg0: i32, %arg1: i32) -> (i32, i32, i32) {
    %c0_i32 = arith.constant 0 : i32
    %c0_i32_0 = arith.constant 0 : i32
    return %arg0, %arg1, %c0_i32 : i32, i32, i32
  }
  func.func @transform_1(%arg0: i32, %arg1: i32) -> (i32, i32, i32) {
    %c0_i32 = arith.constant 0 : i32
    %c0_i32_0 = arith.constant 0 : i32
    %c0_i32_1 = arith.constant 0 : i32
    return %arg0, %c0_i32, %c0_i32_0 : i32, i32, i32
  }
  func.func @transform_2(%arg0: i32, %arg1: i32) -> (i32, i32, i32) {
    %c0_i32 = arith.constant 0 : i32
    %c0_i32_0 = arith.constant 0 : i32
    %c0_i32_1 = arith.constant 0 : i32
    return %arg0, %c0_i32, %c0_i32_0 : i32, i32, i32
  }
  func.func @transform_3(%arg0: i32, %arg1: i32) -> (i32, i32, i32) {
    %c0_i32 = arith.constant 0 : i32
    %c0_i32_0 = arith.constant 0 : i32
    return %arg0, %arg1, %c0_i32 : i32, i32, i32
  }
  func.func @transform_4(%arg0: i32, %arg1: i32) -> (i32, i32) {
    %c0_i32 = arith.constant 0 : i32
    %c0_i32_0 = arith.constant 0 : i32
    %c0_i32_1 = arith.constant 0 : i32
    return %c0_i32, %c0_i32_0 : i32, i32
  }
  func.func @transform_5(%arg0: i32, %arg1: i32) -> i32 {
    %c0_i32 = arith.constant 0 : i32
    %c0_i32_0 = arith.constant 0 : i32
    return %c0_i32 : i32
  }
  func.func @transform_6(%arg0: i32, %arg1: i32) -> (i32, i32, i32) {
    %c0_i32 = arith.constant 0 : i32
    %c0_i32_0 = arith.constant 0 : i32
    return %arg0, %arg1, %c0_i32 : i32, i32, i32
  }
  func.func @transform_7(%arg0: i32, %arg1: i32) -> (i32, i32, i32) {
    %c0_i32 = arith.constant 0 : i32
    %c0_i32_0 = arith.constant 0 : i32
    return %arg0, %arg1, %c0_i32 : i32, i32, i32
  }
}

</mosaic_0001>

<llo_original>
// kernel: tpu_custom_call.1
$region0: #{tpu_custom_call.1}
  #allocation0 [shape = 'u32[]', space=smem, size = 0x4, offset = 0x4, fixed_abs, tag = 'smem constant byte address 0x4 - core index']
  #allocation1 [shape = 'u32[144,128]{1,0:T(1,128)}', space=vmem, size = 0x12000, scoped, tag = 'internal scratch']
  #allocation2 [shape = 'f32[1]{0:T(128)S(6)}', space=smem, size = 0x200, scoped, tag = 'scoped memory for tpu_custom_call.1']
  %s0 = inlined_call_operand.hbm [shape: f32[2,384,128], index: 0, kind: input, shape index: {}]
  %s1 = inlined_call_operand.hbm [shape: f32[2,384,128], index: 1, kind: input, shape index: {}]
  %s2 = inlined_call_operand.hbm [shape: f32[2,384,128], index: 2, kind: input, shape index: {}]
  %s3 = inlined_call_operand.hbm [shape: f32[2,384,128], index: 3, kind: input, shape index: {}]
  %s4 = inlined_call_operand.hbm [shape: f32[1,384], index: 4, kind: input, shape index: {}]
  %s5 = inlined_call_operand.<no memory space> [shape: f32[1], index: 5, kind: input, shape index: {}]
  %s6 = inlined_call_operand.hbm [shape: f32[2,384,128], index: 6, kind: output, shape index: {0}]
  %s7 = inlined_call_operand.hbm [shape: f32[2,384,384], index: 7, kind: output, shape index: {1}]
  %8 = xla_tuple %s6, %s7
  %s9 = sld [smem:[#allocation0]]
  $region85: #{tpu_custom_call.1} parent=0
    _
  %s11 = ssub.s32 1, %s9
  %s12 = scalar_select 0, %s11, %s9
  %13 = sst [smem:[#allocation2]] %s5
  $region1: #{tpu_custom_call.1} parent=0
    #allocation3 [shape = 'u8[131072]{0}', space=vmem, size = 0x20000, scoped, tag = 'input window, operand 0']
    #allocation4 [shape = 's32[2]{0}', space=sflag, size = 0x8, scoped, tag = 'scoped memory for tpu_custom_call.1']
    #allocation5 [shape = 's32[2]{0}', space=sflag, size = 0x8, scoped, tag = 'scoped memory for tpu_custom_call.1']
    #allocation6 [shape = 'u8[196608]{0}', space=vmem, size = 0x30000, scoped, tag = 'input window, operand 1, single buffered']
    #allocation7 [shape = 's32[1]{0}', space=sflag, size = 0x4, scoped, tag = 'scoped memory for tpu_custom_call.1']
    #allocation8 [shape = 'u8[196608]{0}', space=vmem, size = 0x30000, scoped, tag = 'input window, operand 2, single buffered']
    #allocation9 [shape = 'u8[131072]{0}', space=vmem, size = 0x20000, scoped, tag = 'input window, operand 3']
    #allocation10 [shape = 's32[2]{0}', space=sflag, size = 0x8, scoped, tag = 'scoped memory for tpu_custom_call.1']
    #allocation11 [shape = 'u8[1536]{0}', space=vmem, size = 0x800, scoped, tag = 'input window, operand 4, single buffered']
    #allocation12 [shape = 'u8[131072]{0}', space=vmem, size = 0x20000, scoped, tag = 'output window, operand 0']
    #allocation13 [shape = 'u8[393216]{0}', space=vmem, size = 0x60000, scoped, tag = 'output window, operand 1']
    #allocation14 [shape = 's32[2]{0}', space=sflag, size = 0x8, scoped, tag = 'scoped memory for tpu_custom_call.1']
    %14 = vsyncpa [#allocation4], 0
    %s15 = scalar_lea.sflag [#allocation4], 1
    %16 = vsyncpa %s15, 0
    %17 = vsyncpa [#allocation7], 0
    %18 = vsyncpa [#allocation10], 0
    %s19 = scalar_lea.sflag [#allocation10], 1
    %20 = vsyncpa %s19, 0
    %21 = vsyncpa [#allocation5], 0
    %s22 = scalar_lea.sflag [#allocation5], 1
    %23 = vsyncpa %s22, 0
    %24 = vsyncpa [#allocation14], 0
    %s25 = scalar_lea.sflag [#allocation14], 1
    %26 = vsyncpa %s25, 0
    loop: start=0, step=1, limit=8
    $region2: #{tpu_custom_call.1} parent=1 // loop_pre_header
      _
    $region3: #{tpu_custom_call.1} parent=1 // loop_header
      %s28 = sphi 0, %s32
      %p29 = scmp.ge.s32.totalorder %s28, 8
      %s35 = sphi 0, %s47
      %s36 = sphi 0, %s43
      %s37 = sphi 0, %s35
      %s38 = sphi 0, %s36
      %s39 = sphi 0, %s37
      %s40 = sphi 0, %s38
      %s52 = sphi 0, %s54
      %s55 = sphi 0, %s52
      %s56 = sphi 0, %s55
      %s72 = sphi 0, %s56
      %s78 = sphi 0, %s80
      %s81 = sphi 0, %s78
      %s82 = sphi 0, %s81
      %s98 = sphi 0, %s82
      %s104 = sphi 0, %s106
      %s107 = sphi 0, %s104
      %s108 = sphi 0, %s107
      %s124 = sphi 0, %s108
      %s132 = sphi 0, %s134
      %s135 = sphi 0, %s132
      %s136 = sphi 0, %s135
      %s152 = sphi 0, %s136
      %s156 = sphi 0, %s156
      %s158 = sphi 0, %s156
      %s159 = sphi 0, %s158
      %s173 = sphi 0, %s159
      %s177 = sphi 0, %s177
      %s179 = sphi 0, %s177
      %s180 = sphi 0, %s179
      %s194 = sphi 0, %s180
      %s202 = sphi 0, %s204
      %s205 = sphi 0, %s202
      %s206 = sphi 0, %s205
      %s222 = sphi 0, %s206
      %s230 = sphi 0, %s232
      %s233 = sphi 0, %s230
      %s234 = sphi 0, %s233
      %s250 = sphi 0, %s234
    $region4: #{tpu_custom_call.1} parent=1 // loop_header_branch
      %31 = sbr.rel (%p29) target = $region8
    $region5: #{tpu_custom_call.1} parent=1 // loop_body
      %s33 = ssub.s32 %s28, 1
      %s34 = ssub.s32 %s28, 2
      %s41 = sadd.s32 1, %s36
      %p42 = scmp.ge.s32.totalorder %s41, 3
      %s43 = scalar_select %p42, 0, %s41
      %s44 = sadd.s32 1, %s35
      %s45 = scalar_select %p42, %s44, %s35
      %p46 = scmp.ge.s32.totalorder %s45, 2
      %s47 = scalar_select %p46, 0, %s45
      %s48 = ssub.s32 %s35, %s47
      %s49 = ssub.s32 %s36, %s43
      %s50 = sor.u32 %s48, %s49
      %p51 = scmp.eq.s32.totalorder %s50, 0
      %s53 = sadd.s32 %s52, 1
      %s54 = scalar_select %p51, %s52, %s53
      %p57 = pneg %p51
      %p58 = scmp.eq.s32.totalorder %s28, 5
      %p59 = por %p57, %p58
      %p60 = scmp.ne.s32.totalorder %s52, %s55
      %p61 = scmp.eq.s32.totalorder %s28, 0
      %p62 = por %p60, %p61
      %p63 = scmp.ne.s32.totalorder %s52, %s55
      %p64 = scmp.eq.s32.totalorder %s33, 5
      %p65 = por %p63, %p64
      %p66 = scmp.ne.s32.totalorder %s55, %s56
      %p67 = scmp.eq.s32.totalorder %s33, 0
      %p68 = por %p66, %p67
      %p69 = scmp.ne.s32.totalorder %s55, %s56
      %p70 = scmp.eq.s32.totalorder %s34, 5
      %p71 = por %p69, %p70
      %p73 = scmp.ne.s32.totalorder %s56, %s72
      %p74 = scmp.eq.s32.totalorder %s34, 0
      %p75 = por %p73, %p74
      %s76 = ssub.s32 %s35, %s47
      %p77 = scmp.eq.s32.totalorder %s76, 0
      %s79 = sadd.s32 %s78, 1
      %s80 = scalar_select %p77, %s78, %s79
      %p83 = pneg %p77
      %p84 = scmp.eq.s32.totalorder %s28, 5
      %p85 = por %p83, %p84
      %p86 = scmp.ne.s32.totalorder %s78, %s81
      %p87 = scmp.eq.s32.totalorder %s28, 0
      %p88 = por %p86, %p87
      %p89 = scmp.ne.s32.totalorder %s78, %s81
      %p90 = scmp.eq.s32.totalorder %s33, 5
      %p91 = por %p89, %p90
      %p92 = scmp.ne.s32.totalorder %s81, %s82
      %p93 = scmp.eq.s32.totalorder %s33, 0
      %p94 = por %p92, %p93
      %p95 = scmp.ne.s32.totalorder %s81, %s82
      %p96 = scmp.eq.s32.totalorder %s34, 5
      %p97 = por %p95, %p96
      %p99 = scmp.ne.s32.totalorder %s82, %s98
      %p100 = scmp.eq.s32.totalorder %s34, 0
      %p101 = por %p99, %p100
      %s102 = ssub.s32 %s35, %s47
      %p103 = scmp.eq.s32.totalorder %s102, 0
      %s105 = sadd.s32 %s104, 1
      %s106 = scalar_select %p103, %s104, %s105
      %p109 = pneg %p103
      %p110 = scmp.eq.s32.totalorder %s28, 5
      %p111 = por %p109, %p110
      %p112 = scmp.ne.s32.totalorder %s104, %s107
      %p113 = scmp.eq.s32.totalorder %s28, 0
      %p114 = por %p112, %p113
      %p115 = scmp.ne.s32.totalorder %s104, %s107
      %p116 = scmp.eq.s32.totalorder %s33, 5
      %p117 = por %p115, %p116
      %p118 = scmp.ne.s32.totalorder %s107, %s108
      %p119 = scmp.eq.s32.totalorder %s33, 0
      %p120 = por %p118, %p119
      %p121 = scmp.ne.s32.totalorder %s107, %s108
      %p122 = scmp.eq.s32.totalorder %s34, 5
      %p123 = por %p121, %p122
      %p125 = scmp.ne.s32.totalorder %s108, %s124
      %p126 = scmp.eq.s32.totalorder %s34, 0
      %p127 = por %p125, %p126
      %s128 = ssub.s32 %s35, %s47
      %s129 = ssub.s32 %s36, %s43
      %s130 = sor.u32 %s128, %s129
      %p131 = scmp.eq.s32.totalorder %s130, 0
      %s133 = sadd.s32 %s132, 1
      %s134 = scalar_select %p131, %s132, %s133
      %p137 = pneg %p131
      %p138 = scmp.eq.s32.totalorder %s28, 5
      %p139 = por %p137, %p138
      %p140 = scmp.ne.s32.totalorder %s132, %s135
      %p141 = scmp.eq.s32.totalorder %s28, 0
      %p142 = por %p140, %p141
      %p143 = scmp.ne.s32.totalorder %s132, %s135
      %p144 = scmp.eq.s32.totalorder %s33, 5
      %p145 = por %p143, %p144
      %p146 = scmp.ne.s32.totalorder %s135, %s136
      %p147 = scmp.eq.s32.totalorder %s33, 0
      %p148 = por %p146, %p147
      %p149 = scmp.ne.s32.totalorder %s135, %s136
      %p150 = scmp.eq.s32.totalorder %s34, 5
      %p151 = por %p149, %p150
      %p153 = scmp.ne.s32.totalorder %s136, %s152
      %p154 = scmp.eq.s32.totalorder %s34, 0
      %p155 = por %p153, %p154
      %s157 = sadd.s32 %s156, 1
      %p160 = scmp.eq.s32.totalorder %s28, 5
      %p161 = scmp.ne.s32.totalorder %s156, %s158
      %p162 = scmp.eq.s32.totalorder %s28, 0
      %p163 = por %p161, %p162
      %p164 = scmp.ne.s32.totalorder %s156, %s158
      %p165 = scmp.eq.s32.totalorder %s33, 5
      %p166 = por %p164, %p165
      %p167 = scmp.ne.s32.totalorder %s158, %s159
      %p168 = scmp.eq.s32.totalorder %s33, 0
      %p169 = por %p167, %p168
      %p170 = scmp.ne.s32.totalorder %s158, %s159
      %p171 = scmp.eq.s32.totalorder %s34, 5
      %p172 = por %p170, %p171
      %p174 = scmp.ne.s32.totalorder %s159, %s173
      %p175 = scmp.eq.s32.totalorder %s34, 0
      %p176 = por %p174, %p175
      %s178 = sadd.s32 %s177, 1
      %p181 = scmp.eq.s32.totalorder %s28, 5
      %p182 = scmp.ne.s32.totalorder %s177, %s179
      %p183 = scmp.eq.s32.totalorder %s28, 0
      %p184 = por %p182, %p183
      %p185 = scmp.ne.s32.totalorder %s177, %s179
      %p186 = scmp.eq.s32.totalorder %s33, 5
      %p187 = por %p185, %p186
      %p188 = scmp.ne.s32.totalorder %s179, %s180
      %p189 = scmp.eq.s32.totalorder %s33, 0
      %p190 = por %p188, %p189
      %p191 = scmp.ne.s32.totalorder %s179, %s180
      %p192 = scmp.eq.s32.totalorder %s34, 5
      %p193 = por %p191, %p192
      %p195 = scmp.ne.s32.totalorder %s180, %s194
      %p196 = scmp.eq.s32.totalorder %s34, 0
      %p197 = por %p195, %p196
      %s198 = ssub.s32 %s35, %s47
      %s199 = ssub.s32 %s36, %s43
      %s200 = sor.u32 %s198, %s199
      %p201 = scmp.eq.s32.totalorder %s200, 0
      %s203 = sadd.s32 %s202, 1
      %s204 = scalar_select %p201, %s202, %s203
      %p207 = pneg %p201
      %p208 = scmp.eq.s32.totalorder %s28, 5
      %p209 = por %p207, %p208
      %p210 = scmp.ne.s32.totalorder %s202, %s205
      %p211 = scmp.eq.s32.totalorder %s28, 0
      %p212 = por %p210, %p211
      %p213 = scmp.ne.s32.totalorder %s202, %s205
      %p214 = scmp.eq.s32.totalorder %s33, 5
      %p215 = por %p213, %p214
      %p216 = scmp.ne.s32.totalorder %s205, %s206
      %p217 = scmp.eq.s32.totalorder %s33, 0
      %p218 = por %p216, %p217
      %p219 = scmp.ne.s32.totalorder %s205, %s206
      %p220 = scmp.eq.s32.totalorder %s34, 5
      %p221 = por %p219, %p220
      %p223 = scmp.ne.s32.totalorder %s206, %s222
      %p224 = scmp.eq.s32.totalorder %s34, 0
      %p225 = por %p223, %p224
      %s226 = ssub.s32 %s35, %s47
      %s227 = ssub.s32 %s36, %s43
      %s228 = sor.u32 %s226, %s227
      %p229 = scmp.eq.s32.totalorder %s228, 0
      %s231 = sadd.s32 %s230, 1
      %s232 = scalar_select %p229, %s230, %s231
      %p235 = pneg %p229
      %p236 = scmp.eq.s32.totalorder %s28, 5
      %p237 = por %p235, %p236
      %p238 = scmp.ne.s32.totalorder %s230, %s233
      %p239 = scmp.eq.s32.totalorder %s28, 0
      %p240 = por %p238, %p239
      %p241 = scmp.ne.s32.totalorder %s230, %s233
      %p242 = scmp.eq.s32.totalorder %s33, 5
      %p243 = por %p241, %p242
      %p244 = scmp.ne.s32.totalorder %s233, %s234
      %p245 = scmp.eq.s32.totalorder %s33, 0
      %p246 = por %p244, %p245
      %p247 = scmp.ne.s32.totalorder %s233, %s234
      %p248 = scmp.eq.s32.totalorder %s34, 5
      %p249 = por %p247, %p248
      %p251 = scmp.ne.s32.totalorder %s234, %s250
      %p252 = scmp.eq.s32.totalorder %s34, 0
      %p253 = por %p251, %p252
      %p254 = scmp.le.s32.totalorder 1, %s28
      %p255 = scmp.lt.s32.totalorder %s28, 7
      %p256 = pnand %p254, %p255
      %p257 = pneg %p256
      // Predicated region
      $region9: #{tpu_custom_call.1} parent=5 // pred_check
        _
      $region10: #{tpu_custom_call.1} parent=5 // pred_check_branch
        %259 = sbr.rel (%p256) target = $region12
      $region11: #{tpu_custom_call.1} parent=5 // pred_region
        %s260 = ssub.s32 %s28, 1
        // Predicated region
        $region13: #{tpu_custom_call.1} parent=11 // pred_check
          %p261 = pneg %p94
        $region14: #{tpu_custom_call.1} parent=11 // pred_check_branch
          %263 = sbr.rel (%p261) target = $region16
        $region15: #{tpu_custom_call.1} parent=11 // pred_region
          %s265 = ssub.s32 6144, 6144
          %266 = vsyncadd [#allocation7], %s265
          %s267 = smul.addr %s37, 48
          %s268 = smul.addr %s267, 128
          %s269 = scalar_lea.hbm %s1, %s268
          %s270 = sshll.u32 [#allocation6], 4
          %s271 = int_to_ptr.vmem [resolvable:$true] %s270
          %276 = dma.hbm_to_vmem [thread:$0]  %s269, 6144, %s271, [#allocation7], 128, 128, 8
        $region16: #{tpu_custom_call.1} parent=11 // pred_fallthru
          _
        // Predicated region
        $region17: #{tpu_custom_call.1} parent=11 // pred_check
          %p277 = pneg %p120
        $region18: #{tpu_custom_call.1} parent=11 // pred_check_branch
          %279 = sbr.rel (%p277) target = $region20
        $region19: #{tpu_custom_call.1} parent=11 // pred_region
          %s281 = ssub.s32 6144, 6144
          %282 = vsyncadd [#allocation7], %s281
          %s283 = smul.addr %s37, 48
          %s284 = smul.addr %s283, 128
          %s285 = scalar_lea.hbm %s2, %s284
          %s286 = sshll.u32 [#allocation8], 4
          %s287 = int_to_ptr.vmem [resolvable:$true] %s286
          %292 = dma.hbm_to_vmem [thread:$0]  %s285, 6144, %s287, [#allocation7], 128, 128, 8
        $region20: #{tpu_custom_call.1} parent=11 // pred_fallthru
          _
        // Predicated region
        $region21: #{tpu_custom_call.1} parent=11 // pred_check
          %p293 = pneg %p169
        $region22: #{tpu_custom_call.1} parent=11 // pred_check_branch
          %295 = sbr.rel (%p293) target = $region24
        $region23: #{tpu_custom_call.1} parent=11 // pred_region
          %s297 = ssub.s32 48, 48
          %298 = vsyncadd [#allocation10], %s297
          %s300 = sshll.u32 [#allocation11], 4
          %s301 = int_to_ptr.vmem [resolvable:$true] %s300
          %303 = dma.hbm_to_vmem [thread:$0]  %s4, 48, %s301, [#allocation10]
        $region24: #{tpu_custom_call.1} parent=11 // pred_fallthru
          _
        // Predicated region
        $region25: #{tpu_custom_call.1} parent=11 // pred_check
          %p304 = pneg %p190
        $region26: #{tpu_custom_call.1} parent=11 // pred_check_branch
          %306 = sbr.rel (%p304) target = $region28
        $region27: #{tpu_custom_call.1} parent=11 // pred_region
          _
        $region28: #{tpu_custom_call.1} parent=11 // pred_fallthru
          _
      $region12: #{tpu_custom_call.1} parent=5 // pred_fallthru
        _
      %p307 = scmp.lt.s32.totalorder %s28, 6
      // Predicated region
      $region29: #{tpu_custom_call.1} parent=5 // pred_check
        %p308 = pneg %p307
      $region30: #{tpu_custom_call.1} parent=5 // pred_check_branch
        %310 = sbr.rel (%p308) target = $region32
      $region31: #{tpu_custom_call.1} parent=5 // pred_region
        // Predicated region
        $region33: #{tpu_custom_call.1} parent=31 // pred_check
          %p311 = pneg %p62
        $region34: #{tpu_custom_call.1} parent=31 // pred_check_branch
          %313 = sbr.rel (%p311) target = $region36
        $region35: #{tpu_custom_call.1} parent=31 // pred_region
          %s314 = sand.u32 %s52, 1
          %s315 = scalar_lea.sflag [#allocation4], %s314
          %s316 = sand.u32 %s52, 1
          %s317 = smul.addr %s316, 128
          %s318 = scalar_lea.vmem [#allocation3], %s317
          %s319 = smul.u32 16, %s36
          %s321 = ssub.s32 2048, 2048
          %322 = vsyncadd %s315, %s321
          %s323 = smul.addr %s35, 48
          %s324 = sadd.s32 %s319, %s323
          %s325 = smul.addr %s324, 128
          %s326 = scalar_lea.hbm %s0, %s325
          %s327 = sshll.u32 %s318, 4
          %s328 = int_to_ptr.vmem [resolvable:$true] %s327
          %333 = dma.hbm_to_vmem [thread:$0]  %s326, 2048, %s328, %s315, 128, 128, 8
        $region36: #{tpu_custom_call.1} parent=31 // pred_fallthru
          _
        // Predicated region
        $region37: #{tpu_custom_call.1} parent=31 // pred_check
          %p334 = pneg %p142
        $region38: #{tpu_custom_call.1} parent=31 // pred_check_branch
          %336 = sbr.rel (%p334) target = $region40
        $region39: #{tpu_custom_call.1} parent=31 // pred_region
          %s337 = sand.u32 %s28, 1
          %s338 = scalar_lea.sflag [#allocation10], %s337
          %s339 = sand.u32 %s132, 1
          %s340 = smul.addr %s339, 128
          %s341 = scalar_lea.vmem [#allocation9], %s340
          %s342 = smul.u32 16, %s36
          %s344 = ssub.s32 2048, 2048
          %345 = vsyncadd %s338, %s344
          %s346 = smul.addr %s35, 48
          %s347 = sadd.s32 %s342, %s346
          %s348 = smul.addr %s347, 128
          %s349 = scalar_lea.hbm %s3, %s348
          %s350 = sshll.u32 %s341, 4
          %s351 = int_to_ptr.vmem [resolvable:$true] %s350
          %356 = dma.hbm_to_vmem [thread:$0]  %s349, 2048, %s351, %s338, 128, 128, 8
        $region40: #{tpu_custom_call.1} parent=31 // pred_fallthru
          _
      $region32: #{tpu_custom_call.1} parent=5 // pred_fallthru
        _
      %p357 = scmp.le.s32.totalorder 1, %s28
      %p358 = scmp.lt.s32.totalorder %s28, 7
      %p359 = pnand %p357, %p358
      %p360 = pneg %p359
      // Predicated region
      $region41: #{tpu_custom_call.1} parent=5 // pred_check
        _
      $region42: #{tpu_custom_call.1} parent=5 // pred_check_branch
        %362 = sbr.rel (%p359) target = $region44
      $region43: #{tpu_custom_call.1} parent=5 // pred_region
        %s363 = ssub.s32 %s28, 1
        %s364 = sand.u32 %s55, 1
        %s365 = scalar_lea.sflag [#allocation4], %s364
        %s366 = sand.u32 %s55, 1
        %s367 = smul.addr %s366, 128
        %s368 = scalar_lea.vmem [#allocation3], %s367
        // Predicated region
        $region45: #{tpu_custom_call.1} parent=43 // pred_check
          %p369 = pneg %p68
        $region46: #{tpu_custom_call.1} parent=43 // pred_check_branch
          %371 = sbr.rel (%p369) target = $region48
        $region47: #{tpu_custom_call.1} parent=43 // pred_region
          %372 = dma.done %s365, 2048
        $region48: #{tpu_custom_call.1} parent=43 // pred_fallthru
          _
        // Predicated region
        $region49: #{tpu_custom_call.1} parent=43 // pred_check
          %p373 = pneg %p94
        $region50: #{tpu_custom_call.1} parent=43 // pred_check_branch
          %375 = sbr.rel (%p373) target = $region52
        $region51: #{tpu_custom_call.1} parent=43 // pred_region
          %376 = dma.done [#allocation7], 6144
        $region52: #{tpu_custom_call.1} parent=43 // pred_fallthru
          _
        // Predicated region
        $region53: #{tpu_custom_call.1} parent=43 // pred_check
          %p377 = pneg %p120
        $region54: #{tpu_custom_call.1} parent=43 // pred_check_branch
          %379 = sbr.rel (%p377) target = $region56
        $region55: #{tpu_custom_call.1} parent=43 // pred_region
          %380 = dma.done [#allocation7], 6144
        $region56: #{tpu_custom_call.1} parent=43 // pred_fallthru
          _
        %s381 = sand.u32 %s33, 1
        %s382 = scalar_lea.sflag [#allocation10], %s381
        %s383 = sand.u32 %s135, 1
        %s384 = smul.addr %s383, 128
        %s385 = scalar_lea.vmem [#allocation9], %s384
        // Predicated region
        $region57: #{tpu_custom_call.1} parent=43 // pred_check
          %p386 = pneg %p148
        $region58: #{tpu_custom_call.1} parent=43 // pred_check_branch
          %388 = sbr.rel (%p386) target = $region60
        $region59: #{tpu_custom_call.1} parent=43 // pred_region
          %389 = dma.done %s382, 2048
        $region60: #{tpu_custom_call.1} parent=43 // pred_fallthru
          _
        // Predicated region
        $region61: #{tpu_custom_call.1} parent=43 // pred_check
          %p390 = pneg %p169
        $region62: #{tpu_custom_call.1} parent=43 // pred_check_branch
          %392 = sbr.rel (%p390) target = $region64
        $region63: #{tpu_custom_call.1} parent=43 // pred_region
          %393 = dma.done [#allocation10], 48
        $region64: #{tpu_custom_call.1} parent=43 // pred_fallthru
          _
        %s394 = sand.u32 %s55, 1
        %s395 = scalar_lea.sflag [#allocation4], %s394
        %s396 = sand.u32 %s55, 1
        %s397 = smul.addr %s396, 128
        %s398 = scalar_lea.vmem [#allocation3], %s397
        %p399 = pneg %p68
        %p400 = pneg %p65
        %p401 = pneg %p94
        %p402 = pneg %p91
        %p403 = pneg %p120
        %p404 = pneg %p117
        %s405 = sand.u32 %s33, 1
        %s406 = scalar_lea.sflag [#allocation10], %s405
        %s407 = sand.u32 %s135, 1
        %s408 = smul.addr %s407, 128
        %s409 = scalar_lea.vmem [#allocation9], %s408
        %p410 = pneg %p148
        %p411 = pneg %p145
        %p412 = pneg %p169
        %p413 = pneg %p166
        %p414 = pneg %p190
        %p415 = pneg %p187
        %p416 = pneg %p218
        %p417 = pneg %p215
        %s418 = sand.u32 %s205, 1
        %s419 = scalar_lea.sflag [#allocation5], %s418
        %s420 = sand.u32 %s205, 1
        %s421 = smul.addr %s420, 128
        %s422 = scalar_lea.vmem [#allocation12], %s421
        %p423 = pneg %p246
        %p424 = pneg %p243
        %s425 = sand.u32 %s233, 1
        %s426 = scalar_lea.sflag [#allocation14], %s425
        %s427 = sand.u32 %s233, 1
        %s428 = smul.addr %s427, 384
        %s429 = scalar_lea.vmem [#allocation13], %s428
        %s430 = smul.u32 16, %s38
        %s431 = smul.u32 16, %s38
        %s432 = smul.u32 16, %s38
        %s433 = smul.u32 16, %s38
        %v434 = vld [vmem:[%s368] sm:$0xff]
        %v435 = vld [vmem:[%s368 + $0x8] sm:$0xff]
        %v436 = vld [vmem:[%s368 + $0x10] sm:$0xff]
        %v437 = vld [vmem:[%s368 + $0x18] sm:$0xff]
        %v438 = vld [vmem:[%s368 + $0x20] sm:$0xff]
        %v439 = vld [vmem:[%s368 + $0x28] sm:$0xff]
        %v440 = vld [vmem:[%s368 + $0x30] sm:$0xff]
        %v441 = vld [vmem:[%s368 + $0x38] sm:$0xff]
        %v442 = vld [vmem:[%s368 + $0x40] sm:$0xff]
        %v443 = vld [vmem:[%s368 + $0x48] sm:$0xff]
        %v444 = vld [vmem:[%s368 + $0x50] sm:$0xff]
        %v445 = vld [vmem:[%s368 + $0x58] sm:$0xff]
        %v446 = vld [vmem:[%s368 + $0x60] sm:$0xff]
        %v447 = vld [vmem:[%s368 + $0x68] sm:$0xff]
        %v448 = vld [vmem:[%s368 + $0x70] sm:$0xff]
        %v449 = vld [vmem:[%s368 + $0x78] sm:$0xff]
        %v450 = vld [vmem:[#allocation6] sm:$0xff]
        %v451 = vld [vmem:[#allocation6 + $0x8] sm:$0xff]
        %v452 = vld [vmem:[#allocation6 + $0x10] sm:$0xff]
        %v453 = vld [vmem:[#allocation6 + $0x18] sm:$0xff]
        %v454 = vld [vmem:[#allocation6 + $0x20] sm:$0xff]
        %v455 = vld [vmem:[#allocation6 + $0x28] sm:$0xff]
        %v456 = vld [vmem:[#allocation6 + $0x30] sm:$0xff]
        %v457 = vld [vmem:[#allocation6 + $0x38] sm:$0xff]
        %v458 = vld [vmem:[#allocation6 + $0x40] sm:$0xff]
        %v459 = vld [vmem:[#allocation6 + $0x48] sm:$0xff]
        %v460 = vld [vmem:[#allocation6 + $0x50] sm:$0xff]
        %v461 = vld [vmem:[#allocation6 + $0x58] sm:$0xff]
        %v462 = vld [vmem:[#allocation6 + $0x60] sm:$0xff]
        %v463 = vld [vmem:[#allocation6 + $0x68] sm:$0xff]
        %v464 = vld [vmem:[#allocation6 + $0x70] sm:$0xff]
        %v465 = vld [vmem:[#allocation6 + $0x78] sm:$0xff]
        %v466 = vld [vmem:[#allocation6 + $0x80] sm:$0xff]
        %v467 = vld [vmem:[#allocation6 + $0x88] sm:$0xff]
        %v468 = vld [vmem:[#allocation6 + $0x90] sm:$0xff]
        %v469 = vld [vmem:[#allocation6 + $0x98] sm:$0xff]
        %v470 = vld [vmem:[#allocation6 + $0xa0] sm:$0xff]
        %v471 = vld [vmem:[#allocation6 + $0xa8] sm:$0xff]
        %v472 = vld [vmem:[#allocation6 + $0xb0] sm:$0xff]
        %v473 = vld [vmem:[#allocation6 + $0xb8] sm:$0xff]
        %v474 = vld [vmem:[#allocation6 + $0xc0] sm:$0xff]
        %v475 = vld [vmem:[#allocation6 + $0xc8] sm:$0xff]
        %v476 = vld [vmem:[#allocation6 + $0xd0] sm:$0xff]
        %v477 = vld [vmem:[#allocation6 + $0xd8] sm:$0xff]
        %v478 = vld [vmem:[#allocation6 + $0xe0] sm:$0xff]
        %v479 = vld [vmem:[#allocation6 + $0xe8] sm:$0xff]
        %v480 = vld [vmem:[#allocation6 + $0xf0] sm:$0xff]
        %v481 = vld [vmem:[#allocation6 + $0xf8] sm:$0xff]
        %v482 = vld [vmem:[#allocation6 + $0x100] sm:$0xff]
        %v483 = vld [vmem:[#allocation6 + $0x108] sm:$0xff]
        %v484 = vld [vmem:[#allocation6 + $0x110] sm:$0xff]
        %v485 = vld [vmem:[#allocation6 + $0x118] sm:$0xff]
        %v486 = vld [vmem:[#allocation6 + $0x120] sm:$0xff]
        %v487 = vld [vmem:[#allocation6 + $0x128] sm:$0xff]
        %v488 = vld [vmem:[#allocation6 + $0x130] sm:$0xff]
        %v489 = vld [vmem:[#allocation6 + $0x138] sm:$0xff]
        %v490 = vld [vmem:[#allocation6 + $0x140] sm:$0xff]
        %v491 = vld [vmem:[#allocation6 + $0x148] sm:$0xff]
        %v492 = vld [vmem:[#allocation6 + $0x150] sm:$0xff]
        %v493 = vld [vmem:[#allocation6 + $0x158] sm:$0xff]
        %v494 = vld [vmem:[#allocation6 + $0x160] sm:$0xff]
        %v495 = vld [vmem:[#allocation6 + $0x168] sm:$0xff]
        %v496 = vld [vmem:[#allocation6 + $0x170] sm:$0xff]
        %v497 = vld [vmem:[#allocation6 + $0x178] sm:$0xff]
        %498 = vmatprep.subr.mxu0 0.0
        %499 = vmatpush1.xpose.msra.mxu0 %v465
        %500 = vmatprep.subr.mxu0 0.0
        %501 = vmatpush1.xpose.msra.mxu0 %v464
        %502 = vmatprep.subr.mxu0 0.0
        %503 = vmatpush1.xpose.msra.mxu0 %v463
        %504 = vmatprep.subr.mxu0 0.0
        %505 = vmatpush1.xpose.msra.mxu0 %v462
        %506 = vmatprep.subr.mxu0 0.0
        %507 = vmatpush1.xpose.msra.mxu0 %v461
        %508 = vmatprep.subr.mxu0 0.0
        %509 = vmatpush1.xpose.msra.mxu0 %v460
        %510 = vmatprep.subr.mxu0 0.0
        %511 = vmatpush1.xpose.msra.mxu0 %v459
        %512 = vmatprep.subr.mxu0 0.0
        %513 = vmatpush1.xpose.msra.mxu0 %v458
        %514 = vmatprep.subr.mxu0 0.0
        %515 = vmatpush1.xpose.msra.mxu0 %v457
        %516 = vmatprep.subr.mxu0 0.0
        %517 = vmatpush1.xpose.msra.mxu0 %v456
        %518 = vmatprep.subr.mxu0 0.0
        %519 = vmatpush1.xpose.msra.mxu0 %v455
        %520 = vmatprep.subr.mxu0 0.0
        %521 = vmatpush1.xpose.msra.mxu0 %v454
        %522 = vmatprep.subr.mxu0 0.0
        %523 = vmatpush1.xpose.msra.mxu0 %v453
        %524 = vmatprep.subr.mxu0 0.0
        %525 = vmatpush1.xpose.msra.mxu0 %v452
        %526 = vmatprep.subr.mxu0 0.0
        %527 = vmatpush1.xpose.msra.mxu0 %v451
        %528 = vmatprep.subr.mxu0 0.0
        %529 = vmatpush1.xpose.msra.mxu0 %v450
        %530 = vmatprep.subr.mxu0 0.0
        %531 = vmatpush2.xpose.msra.mxu0 %v481
        %532 = vmatprep.subr.mxu0 0.0
        %533 = vmatpush2.xpose.msra.mxu0 %v480
        %534 = vmatprep.subr.mxu0 0.0
        %535 = vmatpush2.xpose.msra.mxu0 %v479
        %536 = vmatprep.subr.mxu0 0.0
        %537 = vmatpush2.xpose.msra.mxu0 %v478
        %538 = vmatprep.subr.mxu0 0.0
        %539 = vmatpush2.xpose.msra.mxu0 %v477
        %540 = vmatprep.subr.mxu0 0.0
        %541 = vmatpush2.xpose.msra.mxu0 %v476
        %542 = vmatprep.subr.mxu0 0.0
        %543 = vmatpush2.xpose.msra.mxu0 %v475
        %544 = vmatprep.subr.mxu0 0.0
        %545 = vmatpush2.xpose.msra.mxu0 %v474
        %546 = vmatprep.subr.mxu0 0.0
        %547 = vmatpush2.xpose.msra.mxu0 %v473
        %548 = vmatprep.subr.mxu0 0.0
        %549 = vmatpush2.xpose.msra.mxu0 %v472
        %550 = vmatprep.subr.mxu0 0.0
        %551 = vmatpush2.xpose.msra.mxu0 %v471
        %552 = vmatprep.subr.mxu0 0.0
        %553 = vmatpush2.xpose.msra.mxu0 %v470
        %554 = vmatprep.subr.mxu0 0.0
        %555 = vmatpush2.xpose.msra.mxu0 %v469
        %556 = vmatprep.subr.mxu0 0.0
        %557 = vmatpush2.xpose.msra.mxu0 %v468
        %558 = vmatprep.subr.mxu0 0.0
        %559 = vmatpush2.xpose.msra.mxu0 %v467
        %560 = vmatprep.subr.mxu0 0.0
        %561 = vmatpush2.xpose.msra.mxu0 %v466
        %562 = vmatprep.mubr.f32.mxu0 0.0
        %563 = vmatmul.mubr.f32.gmra.mxu0 %v434
        %v564 = vpop.f32.mrf.mxu0
        %v565 = vadd.f32 0.0, %v564
        %v566 = vpop.f32.mrf.mxu0
        %v567 = vadd.f32 0.0, %v566
        %568 = vmatprep.mubr.f32.mxu0 0.0
        %569 = vmatmul.mubr.f32.gmra.mxu0 %v435
        %v570 = vpop.f32.mrf.mxu0
        %v571 = vadd.f32 0.0, %v570
        %v572 = vpop.f32.mrf.mxu0
        %v573 = vadd.f32 0.0, %v572
        %574 = vmatprep.mubr.f32.mxu0 0.0
        %575 = vmatmul.mubr.f32.gmra.mxu0 %v436
        %v576 = vpop.f32.mrf.mxu0
        %v577 = vadd.f32 0.0, %v576
        %v578 = vpop.f32.mrf.mxu0
        %v579 = vadd.f32 0.0, %v578
        %580 = vmatprep.mubr.f32.mxu0 0.0
        %581 = vmatmul.mubr.f32.gmra.mxu0 %v437
        %v582 = vpop.f32.mrf.mxu0
        %v583 = vadd.f32 0.0, %v582
        %v584 = vpop.f32.mrf.mxu0
        %v585 = vadd.f32 0.0, %v584
        %586 = vmatprep.mubr.f32.mxu0 0.0
        %587 = vmatmul.mubr.f32.gmra.mxu0 %v438
        %v588 = vpop.f32.mrf.mxu0
        %v589 = vadd.f32 0.0, %v588
        %v590 = vpop.f32.mrf.mxu0
        %v591 = vadd.f32 0.0, %v590
        %592 = vmatprep.mubr.f32.mxu0 0.0
        %593 = vmatmul.mubr.f32.gmra.mxu0 %v439
        %v594 = vpop.f32.mrf.mxu0
        %v595 = vadd.f32 0.0, %v594
        %v596 = vpop.f32.mrf.mxu0
        %v597 = vadd.f32 0.0, %v596
        %598 = vmatprep.mubr.f32.mxu0 0.0
        %599 = vmatmul.mubr.f32.gmra.mxu0 %v440
        %v600 = vpop.f32.mrf.mxu0
        %v601 = vadd.f32 0.0, %v600
        %v602 = vpop.f32.mrf.mxu0
        %v603 = vadd.f32 0.0, %v602
        %604 = vmatprep.mubr.f32.mxu0 0.0
        %605 = vmatmul.mubr.f32.gmra.mxu0 %v441
        %v606 = vpop.f32.mrf.mxu0
        %v607 = vadd.f32 0.0, %v606
        %v608 = vpop.f32.mrf.mxu0
        %v609 = vadd.f32 0.0, %v608
        %610 = vmatprep.mubr.f32.mxu0 0.0
        %611 = vmatmul.mubr.f32.gmra.mxu0 %v442
        %v612 = vpop.f32.mrf.mxu0
        %v613 = vadd.f32 0.0, %v612
        %v614 = vpop.f32.mrf.mxu0
        %v615 = vadd.f32 0.0, %v614
        %616 = vmatprep.mubr.f32.mxu0 0.0
        %617 = vmatmul.mubr.f32.gmra.mxu0 %v443
        %v618 = vpop.f32.mrf.mxu0
        %v619 = vadd.f32 0.0, %v618
        %v620 = vpop.f32.mrf.mxu0
        %v621 = vadd.f32 0.0, %v620
        %622 = vmatprep.mubr.f32.mxu0 0.0
        %623 = vmatmul.mubr.f32.gmra.mxu0 %v444
        %v624 = vpop.f32.mrf.mxu0
        %v625 = vadd.f32 0.0, %v624
        %v626 = vpop.f32.mrf.mxu0
        %v627 = vadd.f32 0.0, %v626
        %628 = vmatprep.mubr.f32.mxu0 0.0
        %629 = vmatmul.mubr.f32.gmra.mxu0 %v445
        %v630 = vpop.f32.mrf.mxu0
        %v631 = vadd.f32 0.0, %v630
        %v632 = vpop.f32.mrf.mxu0
        %v633 = vadd.f32 0.0, %v632
        %634 = vmatprep.mubr.f32.mxu0 0.0
        %635 = vmatmul.mubr.f32.gmra.mxu0 %v446
        %v636 = vpop.f32.mrf.mxu0
        %v637 = vadd.f32 0.0, %v636
        %v638 = vpop.f32.mrf.mxu0
        %v639 = vadd.f32 0.0, %v638
        %640 = vmatprep.mubr.f32.mxu0 0.0
        %641 = vmatmul.mubr.f32.gmra.mxu0 %v447
        %v642 = vpop.f32.mrf.mxu0
        %v643 = vadd.f32 0.0, %v642
        %v644 = vpop.f32.mrf.mxu0
        %v645 = vadd.f32 0.0, %v644
        %646 = vmatprep.mubr.f32.mxu0 0.0
        %647 = vmatmul.mubr.f32.gmra.mxu0 %v448
        %v648 = vpop.f32.mrf.mxu0
        %v649 = vadd.f32 0.0, %v648
        %v650 = vpop.f32.mrf.mxu0
        %v651 = vadd.f32 0.0, %v650
        %652 = vmatprep.mubr.f32.mxu0 0.0
        %653 = vmatmul.mubr.f32.gmra.mxu0 %v449
        %v654 = vpop.f32.mrf.mxu0
        %v655 = vadd.f32 0.0, %v654
        %v656 = vpop.f32.mrf.mxu0
        %v657 = vadd.f32 0.0, %v656
        %658 = vdwg.mxu0
        %659 = vmatprep.subr.mxu0 0.0
        %660 = vmatpush1.xpose.msra.mxu0 %v497
        %661 = vmatprep.subr.mxu0 0.0
        %662 = vmatpush1.xpose.msra.mxu0 %v496
        %663 = vmatprep.subr.mxu0 0.0
        %664 = vmatpush1.xpose.msra.mxu0 %v495
        %665 = vmatprep.subr.mxu0 0.0
        %666 = vmatpush1.xpose.msra.mxu0 %v494
        %667 = vmatprep.subr.mxu0 0.0
        %668 = vmatpush1.xpose.msra.mxu0 %v493
        %669 = vmatprep.subr.mxu0 0.0
        %670 = vmatpush1.xpose.msra.mxu0 %v492
        %671 = vmatprep.subr.mxu0 0.0
        %672 = vmatpush1.xpose.msra.mxu0 %v491
        %673 = vmatprep.subr.mxu0 0.0
        %674 = vmatpush1.xpose.msra.mxu0 %v490
        %675 = vmatprep.subr.mxu0 0.0
        %676 = vmatpush1.xpose.msra.mxu0 %v489
        %677 = vmatprep.subr.mxu0 0.0
        %678 = vmatpush1.xpose.msra.mxu0 %v488
        %679 = vmatprep.subr.mxu0 0.0
        %680 = vmatpush1.xpose.msra.mxu0 %v487
        %681 = vmatprep.subr.mxu0 0.0
        %682 = vmatpush1.xpose.msra.mxu0 %v486
        %683 = vmatprep.subr.mxu0 0.0
        %684 = vmatpush1.xpose.msra.mxu0 %v485
        %685 = vmatprep.subr.mxu0 0.0
        %686 = vmatpush1.xpose.msra.mxu0 %v484
        %687 = vmatprep.subr.mxu0 0.0
        %688 = vmatpush1.xpose.msra.mxu0 %v483
        %689 = vmatprep.subr.mxu0 0.0
        %690 = vmatpush1.xpose.msra.mxu0 %v482
        %691 = vmatprep.subr.mxu0 0.0
        %692 = vmatpush2.xpose.msra.mxu0 0.0
        %693 = vmatprep.subr.mxu0 0.0
        %694 = vmatpush2.xpose.msra.mxu0 0.0
        %695 = vmatprep.subr.mxu0 0.0
        %696 = vmatpush2.xpose.msra.mxu0 0.0
        %697 = vmatprep.subr.mxu0 0.0
        %698 = vmatpush2.xpose.msra.mxu0 0.0
        %699 = vmatprep.subr.mxu0 0.0
        %700 = vmatpush2.xpose.msra.mxu0 0.0
        %701 = vmatprep.subr.mxu0 0.0
        %702 = vmatpush2.xpose.msra.mxu0 0.0
        %703 = vmatprep.subr.mxu0 0.0
        %704 = vmatpush2.xpose.msra.mxu0 0.0
        %705 = vmatprep.subr.mxu0 0.0
        %706 = vmatpush2.xpose.msra.mxu0 0.0
        %707 = vmatprep.subr.mxu0 0.0
        %708 = vmatpush2.xpose.msra.mxu0 0.0
        %709 = vmatprep.subr.mxu0 0.0
        %710 = vmatpush2.xpose.msra.mxu0 0.0
        %711 = vmatprep.subr.mxu0 0.0
        %712 = vmatpush2.xpose.msra.mxu0 0.0
        %713 = vmatprep.subr.mxu0 0.0
        %714 = vmatpush2.xpose.msra.mxu0 0.0
        %715 = vmatprep.subr.mxu0 0.0
        %716 = vmatpush2.xpose.msra.mxu0 0.0
        %717 = vmatprep.subr.mxu0 0.0
        %718 = vmatpush2.xpose.msra.mxu0 0.0
        %719 = vmatprep.subr.mxu0 0.0
        %720 = vmatpush2.xpose.msra.mxu0 0.0
        %721 = vmatprep.subr.mxu0 0.0
        %722 = vmatpush2.xpose.msra.mxu0 0.0
        %723 = vmatprep.mubr.f32.mxu0 0.0
        %724 = vmatmul.mubr.f32.gmra.mxu0 %v434
        %v725 = vpop.f32.mrf.mxu0
        %v726 = vadd.f32 0.0, %v725
        %v727 = vpop.f32.mrf.mxu0
        %728 = vmatprep.mubr.f32.mxu0 0.0
        %729 = vmatmul.mubr.f32.gmra.mxu0 %v435
        %v730 = vpop.f32.mrf.mxu0
        %v731 = vadd.f32 0.0, %v730
        %v732 = vpop.f32.mrf.mxu0
        %733 = vmatprep.mubr.f32.mxu0 0.0
        %734 = vmatmul.mubr.f32.gmra.mxu0 %v436
        %v735 = vpop.f32.mrf.mxu0
        %v736 = vadd.f32 0.0, %v735
        %v737 = vpop.f32.mrf.mxu0
        %738 = vmatprep.mubr.f32.mxu0 0.0
        %739 = vmatmul.mubr.f32.gmra.mxu0 %v437
        %v740 = vpop.f32.mrf.mxu0
        %v741 = vadd.f32 0.0, %v740
        %v742 = vpop.f32.mrf.mxu0
        %743 = vmatprep.mubr.f32.mxu0 0.0
        %744 = vmatmul.mubr.f32.gmra.mxu0 %v438
        %v745 = vpop.f32.mrf.mxu0
        %v746 = vadd.f32 0.0, %v745
        %v747 = vpop.f32.mrf.mxu0
        %748 = vmatprep.mubr.f32.mxu0 0.0
        %749 = vmatmul.mubr.f32.gmra.mxu0 %v439
        %v750 = vpop.f32.mrf.mxu0
        %v751 = vadd.f32 0.0, %v750
        %v752 = vpop.f32.mrf.mxu0
        %753 = vmatprep.mubr.f32.mxu0 0.0
        %754 = vmatmul.mubr.f32.gmra.mxu0 %v440
        %v755 = vpop.f32.mrf.mxu0
        %v756 = vadd.f32 0.0, %v755
        %v757 = vpop.f32.mrf.mxu0
        %758 = vmatprep.mubr.f32.mxu0 0.0
        %759 = vmatmul.mubr.f32.gmra.mxu0 %v441
        %v760 = vpop.f32.mrf.mxu0
        %v761 = vadd.f32 0.0, %v760
        %v762 = vpop.f32.mrf.mxu0
        %763 = vmatprep.mubr.f32.mxu0 0.0
        %764 = vmatmul.mubr.f32.gmra.mxu0 %v442
        %v765 = vpop.f32.mrf.mxu0
        %v766 = vadd.f32 0.0, %v765
        %v767 = vpop.f32.mrf.mxu0
        %768 = vmatprep.mubr.f32.mxu0 0.0
        %769 = vmatmul.mubr.f32.gmra.mxu0 %v443
        %v770 = vpop.f32.mrf.mxu0
        %v771 = vadd.f32 0.0, %v770
        %v772 = vpop.f32.mrf.mxu0
        %773 = vmatprep.mubr.f32.mxu0 0.0
        %774 = vmatmul.mubr.f32.gmra.mxu0 %v444
        %v775 = vpop.f32.mrf.mxu0
        %v776 = vadd.f32 0.0, %v775
        %v777 = vpop.f32.mrf.mxu0
        %778 = vmatprep.mubr.f32.mxu0 0.0
        %779 = vmatmul.mubr.f32.gmra.mxu0 %v445
        %v780 = vpop.f32.mrf.mxu0
        %v781 = vadd.f32 0.0, %v780
        %v782 = vpop.f32.mrf.mxu0
        %783 = vmatprep.mubr.f32.mxu0 0.0
        %784 = vmatmul.mubr.f32.gmra.mxu0 %v446
        %v785 = vpop.f32.mrf.mxu0
        %v786 = vadd.f32 0.0, %v785
        %v787 = vpop.f32.mrf.mxu0
        %788 = vmatprep.mubr.f32.mxu0 0.0
        %789 = vmatmul.mubr.f32.gmra.mxu0 %v447
        %v790 = vpop.f32.mrf.mxu0
        %v791 = vadd.f32 0.0, %v790
        %v792 = vpop.f32.mrf.mxu0
        %793 = vmatprep.mubr.f32.mxu0 0.0
        %794 = vmatmul.mubr.f32.gmra.mxu0 %v448
        %v795 = vpop.f32.mrf.mxu0
        %v796 = vadd.f32 0.0, %v795
        %v797 = vpop.f32.mrf.mxu0
        %798 = vmatprep.mubr.f32.mxu0 0.0
        %799 = vmatmul.mubr.f32.gmra.mxu0 %v449
        %v800 = vpop.f32.mrf.mxu0
        %v801 = vadd.f32 0.0, %v800
        %v802 = vpop.f32.mrf.mxu0
        %803 = vdwg.mxu0
        %v804 = vmax.f32 %v565, %v567
        %v805 = vmax.f32 %v804, %v726
        %806 = vmax.xlane.f32.xlu0 %v805
        %v807 = vpop.xlane.xlu0 %806
        %v808 = vmax.f32 %v571, %v573
        %v809 = vmax.f32 %v808, %v731
        %810 = vmax.xlane.f32.xlu0 %v809
        %v811 = vpop.xlane.xlu0 %810
        %v812 = vmax.f32 %v577, %v579
        %v813 = vmax.f32 %v812, %v736
        %814 = vmax.xlane.f32.xlu0 %v813
        %v815 = vpop.xlane.xlu0 %814
        %v816 = vmax.f32 %v583, %v585
        %v817 = vmax.f32 %v816, %v741
        %818 = vmax.xlane.f32.xlu0 %v817
        %v819 = vpop.xlane.xlu0 %818
        %v820 = vmax.f32 %v589, %v591
        %v821 = vmax.f32 %v820, %v746
        %822 = vmax.xlane.f32.xlu0 %v821
        %v823 = vpop.xlane.xlu0 %822
        %v824 = vmax.f32 %v595, %v597
        %v825 = vmax.f32 %v824, %v751
        %826 = vmax.xlane.f32.xlu0 %v825
        %v827 = vpop.xlane.xlu0 %826
        %v828 = vmax.f32 %v601, %v603
        %v829 = vmax.f32 %v828, %v756
        %830 = vmax.xlane.f32.xlu0 %v829
        %v831 = vpop.xlane.xlu0 %830
        %v832 = vmax.f32 %v607, %v609
        %v833 = vmax.f32 %v832, %v761
        %834 = vmax.xlane.f32.xlu0 %v833
        %v835 = vpop.xlane.xlu0 %834
        %v836 = vmax.f32 %v613, %v615
        %v837 = vmax.f32 %v836, %v766
        %838 = vmax.xlane.f32.xlu0 %v837
        %v839 = vpop.xlane.xlu0 %838
        %v840 = vmax.f32 %v619, %v621
        %v841 = vmax.f32 %v840, %v771
        %842 = vmax.xlane.f32.xlu0 %v841
        %v843 = vpop.xlane.xlu0 %842
        %v844 = vmax.f32 %v625, %v627
        %v845 = vmax.f32 %v844, %v776
        %846 = vmax.xlane.f32.xlu0 %v845
        %v847 = vpop.xlane.xlu0 %846
        %v848 = vmax.f32 %v631, %v633
        %v849 = vmax.f32 %v848, %v781
        %850 = vmax.xlane.f32.xlu0 %v849
        %v851 = vpop.xlane.xlu0 %850
        %v852 = vmax.f32 %v637, %v639
        %v853 = vmax.f32 %v852, %v786
        %854 = vmax.xlane.f32.xlu0 %v853
        %v855 = vpop.xlane.xlu0 %854
        %v856 = vmax.f32 %v643, %v645
        %v857 = vmax.f32 %v856, %v791
        %858 = vmax.xlane.f32.xlu0 %v857
        %v859 = vpop.xlane.xlu0 %858
        %v860 = vmax.f32 %v649, %v651
        %v861 = vmax.f32 %v860, %v796
        %862 = vmax.xlane.f32.xlu0 %v861
        %v863 = vpop.xlane.xlu0 %862
        %v864 = vmax.f32 %v655, %v657
        %v865 = vmax.f32 %v864, %v801
        %866 = vmax.xlane.f32.xlu0 %v865
        %v867 = vpop.xlane.xlu0 %866
        %v868 = vsub.f32 %v565, %v807
        %v869 = vsub.f32 %v567, %v807
        %v870 = vsub.f32 %v726, %v807
        %v871 = vsub.f32 %v571, %v811
        %v872 = vsub.f32 %v573, %v811
        %v873 = vsub.f32 %v731, %v811
        %v874 = vsub.f32 %v577, %v815
        %v875 = vsub.f32 %v579, %v815
        %v876 = vsub.f32 %v736, %v815
        %v877 = vsub.f32 %v583, %v819
        %v878 = vsub.f32 %v585, %v819
        %v879 = vsub.f32 %v741, %v819
        %v880 = vsub.f32 %v589, %v823
        %v881 = vsub.f32 %v591, %v823
        %v882 = vsub.f32 %v746, %v823
        %v883 = vsub.f32 %v595, %v827
        %v884 = vsub.f32 %v597, %v827
        %v885 = vsub.f32 %v751, %v827
        %v886 = vsub.f32 %v601, %v831
        %v887 = vsub.f32 %v603, %v831
        %v888 = vsub.f32 %v756, %v831
        %v889 = vsub.f32 %v607, %v835
        %v890 = vsub.f32 %v609, %v835
        %v891 = vsub.f32 %v761, %v835
        %v892 = vsub.f32 %v613, %v839
        %v893 = vsub.f32 %v615, %v839
        %v894 = vsub.f32 %v766, %v839
        %v895 = vsub.f32 %v619, %v843
        %v896 = vsub.f32 %v621, %v843
        %v897 = vsub.f32 %v771, %v843
        %v898 = vsub.f32 %v625, %v847
        %v899 = vsub.f32 %v627, %v847
        %v900 = vsub.f32 %v776, %v847
        %v901 = vsub.f32 %v631, %v851
        %v902 = vsub.f32 %v633, %v851
        %v903 = vsub.f32 %v781, %v851
        %v904 = vsub.f32 %v637, %v855
        %v905 = vsub.f32 %v639, %v855
        %v906 = vsub.f32 %v786, %v855
        %v907 = vsub.f32 %v643, %v859
        %v908 = vsub.f32 %v645, %v859
        %v909 = vsub.f32 %v791, %v859
        %v910 = vsub.f32 %v649, %v863
        %v911 = vsub.f32 %v651, %v863
        %v912 = vsub.f32 %v796, %v863
        %v913 = vsub.f32 %v655, %v867
        %v914 = vsub.f32 %v657, %v867
        %v915 = vsub.f32 %v801, %v867
        %v916 = vmul.f32 %v868, 1.442695
        %v917 = vpow.pop %v916
        %v918 = vmul.f32 %v869, 1.442695
        %v919 = vpow.pop %v918
        %v920 = vmul.f32 %v870, 1.442695
        %v921 = vpow.pop %v920
        %v922 = vmul.f32 %v871, 1.442695
        %v923 = vpow.pop %v922
        %v924 = vmul.f32 %v872, 1.442695
        %v925 = vpow.pop %v924
        %v926 = vmul.f32 %v873, 1.442695
        %v927 = vpow.pop %v926
        %v928 = vmul.f32 %v874, 1.442695
        %v929 = vpow.pop %v928
        %v930 = vmul.f32 %v875, 1.442695
        %v931 = vpow.pop %v930
        %v932 = vmul.f32 %v876, 1.442695
        %v933 = vpow.pop %v932
        %v934 = vmul.f32 %v877, 1.442695
        %v935 = vpow.pop %v934
        %v936 = vmul.f32 %v878, 1.442695
        %v937 = vpow.pop %v936
        %v938 = vmul.f32 %v879, 1.442695
        %v939 = vpow.pop %v938
        %v940 = vmul.f32 %v880, 1.442695
        %v941 = vpow.pop %v940
        %v942 = vmul.f32 %v881, 1.442695
        %v943 = vpow.pop %v942
        %v944 = vmul.f32 %v882, 1.442695
        %v945 = vpow.pop %v944
        %v946 = vmul.f32 %v883, 1.442695
        %v947 = vpow.pop %v946
        %v948 = vmul.f32 %v884, 1.442695
        %v949 = vpow.pop %v948
        %v950 = vmul.f32 %v885, 1.442695
        %v951 = vpow.pop %v950
        %v952 = vmul.f32 %v886, 1.442695
        %v953 = vpow.pop %v952
        %v954 = vmul.f32 %v887, 1.442695
        %v955 = vpow.pop %v954
        %v956 = vmul.f32 %v888, 1.442695
        %v957 = vpow.pop %v956
        %v958 = vmul.f32 %v889, 1.442695
        %v959 = vpow.pop %v958
        %v960 = vmul.f32 %v890, 1.442695
        %v961 = vpow.pop %v960
        %v962 = vmul.f32 %v891, 1.442695
        %v963 = vpow.pop %v962
        %v964 = vmul.f32 %v892, 1.442695
        %v965 = vpow.pop %v964
        %v966 = vmul.f32 %v893, 1.442695
        %v967 = vpow.pop %v966
        %v968 = vmul.f32 %v894, 1.442695
        %v969 = vpow.pop %v968
        %v970 = vmul.f32 %v895, 1.442695
        %v971 = vpow.pop %v970
        %v972 = vmul.f32 %v896, 1.442695
        %v973 = vpow.pop %v972
        %v974 = vmul.f32 %v897, 1.442695
        %v975 = vpow.pop %v974
        %v976 = vmul.f32 %v898, 1.442695
        %v977 = vpow.pop %v976
        %v978 = vmul.f32 %v899, 1.442695
        %v979 = vpow.pop %v978
        %v980 = vmul.f32 %v900, 1.442695
        %v981 = vpow.pop %v980
        %v982 = vmul.f32 %v901, 1.442695
        %v983 = vpow.pop %v982
        %v984 = vmul.f32 %v902, 1.442695
        %v985 = vpow.pop %v984
        %v986 = vmul.f32 %v903, 1.442695
        %v987 = vpow.pop %v986
        %v988 = vmul.f32 %v904, 1.442695
        %v989 = vpow.pop %v988
        %v990 = vmul.f32 %v905, 1.442695
        %v991 = vpow.pop %v990
        %v992 = vmul.f32 %v906, 1.442695
        %v993 = vpow.pop %v992
        %v994 = vmul.f32 %v907, 1.442695
        %v995 = vpow.pop %v994
        %v996 = vmul.f32 %v908, 1.442695
        %v997 = vpow.pop %v996
        %v998 = vmul.f32 %v909, 1.442695
        %v999 = vpow.pop %v998
        %v1000 = vmul.f32 %v910, 1.442695
        %v1001 = vpow.pop %v1000
        %v1002 = vmul.f32 %v911, 1.442695
        %v1003 = vpow.pop %v1002
        %v1004 = vmul.f32 %v912, 1.442695
        %v1005 = vpow.pop %v1004
        %v1006 = vmul.f32 %v913, 1.442695
        %v1007 = vpow.pop %v1006
        %v1008 = vmul.f32 %v914, 1.442695
        %v1009 = vpow.pop %v1008
        %v1010 = vmul.f32 %v915, 1.442695
        %v1011 = vpow.pop %v1010
        %v1012 = vadd.f32 %v917, %v919
        %v1013 = vadd.f32 %v1012, %v921
        %1014 = vadd.xlane.f32.xlu0 %v1013
        %v1015 = vpop.xlane.xlu0 %1014
        %v1016 = vadd.f32 %v923, %v925
        %v1017 = vadd.f32 %v1016, %v927
        %1018 = vadd.xlane.f32.xlu0 %v1017
        %v1019 = vpop.xlane.xlu0 %1018
        %v1020 = vadd.f32 %v929, %v931
        %v1021 = vadd.f32 %v1020, %v933
        %1022 = vadd.xlane.f32.xlu0 %v1021
        %v1023 = vpop.xlane.xlu0 %1022
        %v1024 = vadd.f32 %v935, %v937
        %v1025 = vadd.f32 %v1024, %v939
        %1026 = vadd.xlane.f32.xlu0 %v1025
        %v1027 = vpop.xlane.xlu0 %1026
        %v1028 = vadd.f32 %v941, %v943
        %v1029 = vadd.f32 %v1028, %v945
        %1030 = vadd.xlane.f32.xlu0 %v1029
        %v1031 = vpop.xlane.xlu0 %1030
        %v1032 = vadd.f32 %v947, %v949
        %v1033 = vadd.f32 %v1032, %v951
        %1034 = vadd.xlane.f32.xlu0 %v1033
        %v1035 = vpop.xlane.xlu0 %1034
        %v1036 = vadd.f32 %v953, %v955
        %v1037 = vadd.f32 %v1036, %v957
        %1038 = vadd.xlane.f32.xlu0 %v1037
        %v1039 = vpop.xlane.xlu0 %1038
        %v1040 = vadd.f32 %v959, %v961
        %v1041 = vadd.f32 %v1040, %v963
        %1042 = vadd.xlane.f32.xlu0 %v1041
        %v1043 = vpop.xlane.xlu0 %1042
        %v1044 = vadd.f32 %v965, %v967
        %v1045 = vadd.f32 %v1044, %v969
        %1046 = vadd.xlane.f32.xlu0 %v1045
        %v1047 = vpop.xlane.xlu0 %1046
        %v1048 = vadd.f32 %v971, %v973
        %v1049 = vadd.f32 %v1048, %v975
        %1050 = vadd.xlane.f32.xlu0 %v1049
        %v1051 = vpop.xlane.xlu0 %1050
        %v1052 = vadd.f32 %v977, %v979
        %v1053 = vadd.f32 %v1052, %v981
        %1054 = vadd.xlane.f32.xlu0 %v1053
        %v1055 = vpop.xlane.xlu0 %1054
        %v1056 = vadd.f32 %v983, %v985
        %v1057 = vadd.f32 %v1056, %v987
        %1058 = vadd.xlane.f32.xlu0 %v1057
        %v1059 = vpop.xlane.xlu0 %1058
        %v1060 = vadd.f32 %v989, %v991
        %v1061 = vadd.f32 %v1060, %v993
        %1062 = vadd.xlane.f32.xlu0 %v1061
        %v1063 = vpop.xlane.xlu0 %1062
        %v1064 = vadd.f32 %v995, %v997
        %v1065 = vadd.f32 %v1064, %v999
        %1066 = vadd.xlane.f32.xlu0 %v1065
        %v1067 = vpop.xlane.xlu0 %1066
        %v1068 = vadd.f32 %v1001, %v1003
        %v1069 = vadd.f32 %v1068, %v1005
        %1070 = vadd.xlane.f32.xlu0 %v1069
        %v1071 = vpop.xlane.xlu0 %1070
        %v1072 = vadd.f32 %v1007, %v1009
        %v1073 = vadd.f32 %v1072, %v1011
        %1074 = vadd.xlane.f32.xlu0 %v1073
        %v1075 = vpop.xlane.xlu0 %1074
        %v1076 = vrcp.pop %v1015
        %v1077 = vmul.f32 %v917, %v1076
        %v1078 = vmul.f32 %v919, %v1076
        %v1079 = vmul.f32 %v921, %v1076
        %v1080 = vrcp.pop %v1019
        %v1081 = vmul.f32 %v923, %v1080
        %v1082 = vmul.f32 %v925, %v1080
        %v1083 = vmul.f32 %v927, %v1080
        %v1084 = vrcp.pop %v1023
        %v1085 = vmul.f32 %v929, %v1084
        %v1086 = vmul.f32 %v931, %v1084
        %v1087 = vmul.f32 %v933, %v1084
        %v1088 = vrcp.pop %v1027
        %v1089 = vmul.f32 %v935, %v1088
        %v1090 = vmul.f32 %v937, %v1088
        %v1091 = vmul.f32 %v939, %v1088
        %v1092 = vrcp.pop %v1031
        %v1093 = vmul.f32 %v941, %v1092
        %v1094 = vmul.f32 %v943, %v1092
        %v1095 = vmul.f32 %v945, %v1092
        %v1096 = vrcp.pop %v1035
        %v1097 = vmul.f32 %v947, %v1096
        %v1098 = vmul.f32 %v949, %v1096
        %v1099 = vmul.f32 %v951, %v1096
        %v1100 = vrcp.pop %v1039
        %v1101 = vmul.f32 %v953, %v1100
        %v1102 = vmul.f32 %v955, %v1100
        %v1103 = vmul.f32 %v957, %v1100
        %v1104 = vrcp.pop %v1043
        %v1105 = vmul.f32 %v959, %v1104
        %v1106 = vmul.f32 %v961, %v1104
        %v1107 = vmul.f32 %v963, %v1104
        %v1108 = vrcp.pop %v1047
        %v1109 = vmul.f32 %v965, %v1108
        %v1110 = vmul.f32 %v967, %v1108
        %v1111 = vmul.f32 %v969, %v1108
        %v1112 = vrcp.pop %v1051
        %v1113 = vmul.f32 %v971, %v1112
        %v1114 = vmul.f32 %v973, %v1112
        %v1115 = vmul.f32 %v975, %v1112
        %v1116 = vrcp.pop %v1055
        %v1117 = vmul.f32 %v977, %v1116
        %v1118 = vmul.f32 %v979, %v1116
        %v1119 = vmul.f32 %v981, %v1116
        %v1120 = vrcp.pop %v1059
        %v1121 = vmul.f32 %v983, %v1120
        %v1122 = vmul.f32 %v985, %v1120
        %v1123 = vmul.f32 %v987, %v1120
        %v1124 = vrcp.pop %v1063
        %v1125 = vmul.f32 %v989, %v1124
        %v1126 = vmul.f32 %v991, %v1124
        %v1127 = vmul.f32 %v993, %v1124
        %v1128 = vrcp.pop %v1067
        %v1129 = vmul.f32 %v995, %v1128
        %v1130 = vmul.f32 %v997, %v1128
        %v1131 = vmul.f32 %v999, %v1128
        %v1132 = vrcp.pop %v1071
        %v1133 = vmul.f32 %v1001, %v1132
        %v1134 = vmul.f32 %v1003, %v1132
        %v1135 = vmul.f32 %v1005, %v1132
        %v1136 = vrcp.pop %v1075
        %v1137 = vmul.f32 %v1007, %v1136
        %v1138 = vmul.f32 %v1009, %v1136
        %v1139 = vmul.f32 %v1011, %v1136
        %1140 = vst [vmem:[%s429] sm:$0xff] %v1077
        %1141 = vst [vmem:[%s429 + $0x8] sm:$0xff] %v1078
        %1142 = vst [vmem:[%s429 + $0x10] sm:$0xff] %v1079
        %1143 = vst [vmem:[%s429 + $0x18] sm:$0xff] %v1081
        %1144 = vst [vmem:[%s429 + $0x20] sm:$0xff] %v1082
        %1145 = vst [vmem:[%s429 + $0x28] sm:$0xff] %v1083
        %1146 = vst [vmem:[%s429 + $0x30] sm:$0xff] %v1085
        %1147 = vst [vmem:[%s429 + $0x38] sm:$0xff] %v1086
        %1148 = vst [vmem:[%s429 + $0x40] sm:$0xff] %v1087
        %1149 = vst [vmem:[%s429 + $0x48] sm:$0xff] %v1089
        %1150 = vst [vmem:[%s429 + $0x50] sm:$0xff] %v1090
        %1151 = vst [vmem:[%s429 + $0x58] sm:$0xff] %v1091
        %1152 = vst [vmem:[%s429 + $0x60] sm:$0xff] %v1093
        %1153 = vst [vmem:[%s429 + $0x68] sm:$0xff] %v1094
        %1154 = vst [vmem:[%s429 + $0x70] sm:$0xff] %v1095
        %1155 = vst [vmem:[%s429 + $0x78] sm:$0xff] %v1097
        %1156 = vst [vmem:[%s429 + $0x80] sm:$0xff] %v1098
        %1157 = vst [vmem:[%s429 + $0x88] sm:$0xff] %v1099
        %1158 = vst [vmem:[%s429 + $0x90] sm:$0xff] %v1101
        %1159 = vst [vmem:[%s429 + $0x98] sm:$0xff] %v1102
        %1160 = vst [vmem:[%s429 + $0xa0] sm:$0xff] %v1103
        %1161 = vst [vmem:[%s429 + $0xa8] sm:$0xff] %v1105
        %1162 = vst [vmem:[%s429 + $0xb0] sm:$0xff] %v1106
        %1163 = vst [vmem:[%s429 + $0xb8] sm:$0xff] %v1107
        %1164 = vst [vmem:[%s429 + $0xc0] sm:$0xff] %v1109
        %1165 = vst [vmem:[%s429 + $0xc8] sm:$0xff] %v1110
        %1166 = vst [vmem:[%s429 + $0xd0] sm:$0xff] %v1111
        %1167 = vst [vmem:[%s429 + $0xd8] sm:$0xff] %v1113
        %1168 = vst [vmem:[%s429 + $0xe0] sm:$0xff] %v1114
        %1169 = vst [vmem:[%s429 + $0xe8] sm:$0xff] %v1115
        %1170 = vst [vmem:[%s429 + $0xf0] sm:$0xff] %v1117
        %1171 = vst [vmem:[%s429 + $0xf8] sm:$0xff] %v1118
        %1172 = vst [vmem:[%s429 + $0x100] sm:$0xff] %v1119
        %1173 = vst [vmem:[%s429 + $0x108] sm:$0xff] %v1121
        %1174 = vst [vmem:[%s429 + $0x110] sm:$0xff] %v1122
        %1175 = vst [vmem:[%s429 + $0x118] sm:$0xff] %v1123
        %1176 = vst [vmem:[%s429 + $0x120] sm:$0xff] %v1125
        %1177 = vst [vmem:[%s429 + $0x128] sm:$0xff] %v1126
        %1178 = vst [vmem:[%s429 + $0x130] sm:$0xff] %v1127
        %1179 = vst [vmem:[%s429 + $0x138] sm:$0xff] %v1129
        %1180 = vst [vmem:[%s429 + $0x140] sm:$0xff] %v1130
        %1181 = vst [vmem:[%s429 + $0x148] sm:$0xff] %v1131
        %1182 = vst [vmem:[%s429 + $0x150] sm:$0xff] %v1133
        %1183 = vst [vmem:[%s429 + $0x158] sm:$0xff] %v1134
        %1184 = vst [vmem:[%s429 + $0x160] sm:$0xff] %v1135
        %1185 = vst [vmem:[%s429 + $0x168] sm:$0xff] %v1137
        %1186 = vst [vmem:[%s429 + $0x170] sm:$0xff] %v1138
        %1187 = vst [vmem:[%s429 + $0x178] sm:$0xff] %v1139
        %v1188 = vld [vmem:[#allocation8] sm:$0xff]
        %v1189 = vld [vmem:[#allocation8 + $0x8] sm:$0xff]
        %v1190 = vld [vmem:[#allocation8 + $0x10] sm:$0xff]
        %v1191 = vld [vmem:[#allocation8 + $0x18] sm:$0xff]
        %v1192 = vld [vmem:[#allocation8 + $0x20] sm:$0xff]
        %v1193 = vld [vmem:[#allocation8 + $0x28] sm:$0xff]
        %v1194 = vld [vmem:[#allocation8 + $0x30] sm:$0xff]
        %v1195 = vld [vmem:[#allocation8 + $0x38] sm:$0xff]
        %v1196 = vld [vmem:[#allocation8 + $0x40] sm:$0xff]
        %v1197 = vld [vmem:[#allocation8 + $0x48] sm:$0xff]
        %v1198 = vld [vmem:[#allocation8 + $0x50] sm:$0xff]
        %v1199 = vld [vmem:[#allocation8 + $0x58] sm:$0xff]
        %v1200 = vld [vmem:[#allocation8 + $0x60] sm:$0xff]
        %v1201 = vld [vmem:[#allocation8 + $0x68] sm:$0xff]
        %v1202 = vld [vmem:[#allocation8 + $0x70] sm:$0xff]
        %v1203 = vld [vmem:[#allocation8 + $0x78] sm:$0xff]
        %v1204 = vld [vmem:[#allocation8 + $0x80] sm:$0xff]
        %v1205 = vld [vmem:[#allocation8 + $0x88] sm:$0xff]
        %v1206 = vld [vmem:[#allocation8 + $0x90] sm:$0xff]
        %v1207 = vld [vmem:[#allocation8 + $0x98] sm:$0xff]
        %v1208 = vld [vmem:[#allocation8 + $0xa0] sm:$0xff]
        %v1209 = vld [vmem:[#allocation8 + $0xa8] sm:$0xff]
        %v1210 = vld [vmem:[#allocation8 + $0xb0] sm:$0xff]
        %v1211 = vld [vmem:[#allocation8 + $0xb8] sm:$0xff]
        %v1212 = vld [vmem:[#allocation8 + $0xc0] sm:$0xff]
        %v1213 = vld [vmem:[#allocation8 + $0xc8] sm:$0xff]
        %v1214 = vld [vmem:[#allocation8 + $0xd0] sm:$0xff]
        %v1215 = vld [vmem:[#allocation8 + $0xd8] sm:$0xff]
        %v1216 = vld [vmem:[#allocation8 + $0xe0] sm:$0xff]
        %v1217 = vld [vmem:[#allocation8 + $0xe8] sm:$0xff]
        %v1218 = vld [vmem:[#allocation8 + $0xf0] sm:$0xff]
        %v1219 = vld [vmem:[#allocation8 + $0xf8] sm:$0xff]
        %v1220 = vld [vmem:[#allocation8 + $0x100] sm:$0xff]
        %v1221 = vld [vmem:[#allocation8 + $0x108] sm:$0xff]
        %v1222 = vld [vmem:[#allocation8 + $0x110] sm:$0xff]
        %v1223 = vld [vmem:[#allocation8 + $0x118] sm:$0xff]
        %v1224 = vld [vmem:[#allocation8 + $0x120] sm:$0xff]
        %v1225 = vld [vmem:[#allocation8 + $0x128] sm:$0xff]
        %v1226 = vld [vmem:[#allocation8 + $0x130] sm:$0xff]
        %v1227 = vld [vmem:[#allocation8 + $0x138] sm:$0xff]
        %v1228 = vld [vmem:[#allocation8 + $0x140] sm:$0xff]
        %v1229 = vld [vmem:[#allocation8 + $0x148] sm:$0xff]
        %v1230 = vld [vmem:[#allocation8 + $0x150] sm:$0xff]
        %v1231 = vld [vmem:[#allocation8 + $0x158] sm:$0xff]
        %v1232 = vld [vmem:[#allocation8 + $0x160] sm:$0xff]
        %v1233 = vld [vmem:[#allocation8 + $0x168] sm:$0xff]
        %v1234 = vld [vmem:[#allocation8 + $0x170] sm:$0xff]
        %v1235 = vld [vmem:[#allocation8 + $0x178] sm:$0xff]
        %1236 = vmatprep.subr.mxu0 0.0
        %1237 = vmatpush1.msra.mxu0 %v1203
        %1238 = vmatprep.subr.mxu0 0.0
        %1239 = vmatpush1.msra.mxu0 %v1202
        %1240 = vmatprep.subr.mxu0 0.0
        %1241 = vmatpush1.msra.mxu0 %v1201
        %1242 = vmatprep.subr.mxu0 0.0
        %1243 = vmatpush1.msra.mxu0 %v1200
        %1244 = vmatprep.subr.mxu0 0.0
        %1245 = vmatpush1.msra.mxu0 %v1199
        %1246 = vmatprep.subr.mxu0 0.0
        %1247 = vmatpush1.msra.mxu0 %v1198
        %1248 = vmatprep.subr.mxu0 0.0
        %1249 = vmatpush1.msra.mxu0 %v1197
        %1250 = vmatprep.subr.mxu0 0.0
        %1251 = vmatpush1.msra.mxu0 %v1196
        %1252 = vmatprep.subr.mxu0 0.0
        %1253 = vmatpush1.msra.mxu0 %v1195
        %1254 = vmatprep.subr.mxu0 0.0
        %1255 = vmatpush1.msra.mxu0 %v1194
        %1256 = vmatprep.subr.mxu0 0.0
        %1257 = vmatpush1.msra.mxu0 %v1193
        %1258 = vmatprep.subr.mxu0 0.0
        %1259 = vmatpush1.msra.mxu0 %v1192
        %1260 = vmatprep.subr.mxu0 0.0
        %1261 = vmatpush1.msra.mxu0 %v1191
        %1262 = vmatprep.subr.mxu0 0.0
        %1263 = vmatpush1.msra.mxu0 %v1190
        %1264 = vmatprep.subr.mxu0 0.0
        %1265 = vmatpush1.msra.mxu0 %v1189
        %1266 = vmatprep.subr.mxu0 0.0
        %1267 = vmatpush1.msra.mxu0 %v1188
        %1268 = vmatprep.subr.mxu0 0.0
        %1269 = vmatpush2.msra.mxu0 %v1219
        %1270 = vmatprep.subr.mxu0 0.0
        %1271 = vmatpush2.msra.mxu0 %v1218
        %1272 = vmatprep.subr.mxu0 0.0
        %1273 = vmatpush2.msra.mxu0 %v1217
        %1274 = vmatprep.subr.mxu0 0.0
        %1275 = vmatpush2.msra.mxu0 %v1216
        %1276 = vmatprep.subr.mxu0 0.0
        %1277 = vmatpush2.msra.mxu0 %v1215
        %1278 = vmatprep.subr.mxu0 0.0
        %1279 = vmatpush2.msra.mxu0 %v1214
        %1280 = vmatprep.subr.mxu0 0.0
        %1281 = vmatpush2.msra.mxu0 %v1213
        %1282 = vmatprep.subr.mxu0 0.0
        %1283 = vmatpush2.msra.mxu0 %v1212
        %1284 = vmatprep.subr.mxu0 0.0
        %1285 = vmatpush2.msra.mxu0 %v1211
        %1286 = vmatprep.subr.mxu0 0.0
        %1287 = vmatpush2.msra.mxu0 %v1210
        %1288 = vmatprep.subr.mxu0 0.0
        %1289 = vmatpush2.msra.mxu0 %v1209
        %1290 = vmatprep.subr.mxu0 0.0
        %1291 = vmatpush2.msra.mxu0 %v1208
        %1292 = vmatprep.subr.mxu0 0.0
        %1293 = vmatpush2.msra.mxu0 %v1207
        %1294 = vmatprep.subr.mxu0 0.0
        %1295 = vmatpush2.msra.mxu0 %v1206
        %1296 = vmatprep.subr.mxu0 0.0
        %1297 = vmatpush2.msra.mxu0 %v1205
        %1298 = vmatprep.subr.mxu0 0.0
        %1299 = vmatpush2.msra.mxu0 %v1204
        %1300 = vmatprep.mubr.f32.mxu0 %v1078
        %1301 = vmatmul.mubr.f32.gmra.mxu0 %v1077
        %v1302 = vpop.f32.mrf.mxu0
        %v1303 = vadd.f32 0.0, %v1302
        %v1304 = vpop.f32.mrf.mxu0
        %1305 = vmatprep.mubr.f32.mxu0 %v1082
        %1306 = vmatmul.mubr.f32.gmra.mxu0 %v1081
        %v1307 = vpop.f32.mrf.mxu0
        %v1308 = vadd.f32 0.0, %v1307
        %v1309 = vpop.f32.mrf.mxu0
        %1310 = vmatprep.mubr.f32.mxu0 %v1086
        %1311 = vmatmul.mubr.f32.gmra.mxu0 %v1085
        %v1312 = vpop.f32.mrf.mxu0
        %v1313 = vadd.f32 0.0, %v1312
        %v1314 = vpop.f32.mrf.mxu0
        %1315 = vmatprep.mubr.f32.mxu0 %v1090
        %1316 = vmatmul.mubr.f32.gmra.mxu0 %v1089
        %v1317 = vpop.f32.mrf.mxu0
        %v1318 = vadd.f32 0.0, %v1317
        %v1319 = vpop.f32.mrf.mxu0
        %1320 = vmatprep.mubr.f32.mxu0 %v1094
        %1321 = vmatmul.mubr.f32.gmra.mxu0 %v1093
        %v1322 = vpop.f32.mrf.mxu0
        %v1323 = vadd.f32 0.0, %v1322
        %v1324 = vpop.f32.mrf.mxu0
        %1325 = vmatprep.mubr.f32.mxu0 %v1098
        %1326 = vmatmul.mubr.f32.gmra.mxu0 %v1097
        %v1327 = vpop.f32.mrf.mxu0
        %v1328 = vadd.f32 0.0, %v1327
        %v1329 = vpop.f32.mrf.mxu0
        %1330 = vmatprep.mubr.f32.mxu0 %v1102
        %1331 = vmatmul.mubr.f32.gmra.mxu0 %v1101
        %v1332 = vpop.f32.mrf.mxu0
        %v1333 = vadd.f32 0.0, %v1332
        %v1334 = vpop.f32.mrf.mxu0
        %1335 = vmatprep.mubr.f32.mxu0 %v1106
        %1336 = vmatmul.mubr.f32.gmra.mxu0 %v1105
        %v1337 = vpop.f32.mrf.mxu0
        %v1338 = vadd.f32 0.0, %v1337
        %v1339 = vpop.f32.mrf.mxu0
        %1340 = vmatprep.mubr.f32.mxu0 %v1110
        %1341 = vmatmul.mubr.f32.gmra.mxu0 %v1109
        %v1342 = vpop.f32.mrf.mxu0
        %v1343 = vadd.f32 0.0, %v1342
        %v1344 = vpop.f32.mrf.mxu0
        %1345 = vmatprep.mubr.f32.mxu0 %v1114
        %1346 = vmatmul.mubr.f32.gmra.mxu0 %v1113
        %v1347 = vpop.f32.mrf.mxu0
        %v1348 = vadd.f32 0.0, %v1347
        %v1349 = vpop.f32.mrf.mxu0
        %1350 = vmatprep.mubr.f32.mxu0 %v1118
        %1351 = vmatmul.mubr.f32.gmra.mxu0 %v1117
        %v1352 = vpop.f32.mrf.mxu0
        %v1353 = vadd.f32 0.0, %v1352
        %v1354 = vpop.f32.mrf.mxu0
        %1355 = vmatprep.mubr.f32.mxu0 %v1122
        %1356 = vmatmul.mubr.f32.gmra.mxu0 %v1121
        %v1357 = vpop.f32.mrf.mxu0
        %v1358 = vadd.f32 0.0, %v1357
        %v1359 = vpop.f32.mrf.mxu0
        %1360 = vmatprep.mubr.f32.mxu0 %v1126
        %1361 = vmatmul.mubr.f32.gmra.mxu0 %v1125
        %v1362 = vpop.f32.mrf.mxu0
        %v1363 = vadd.f32 0.0, %v1362
        %v1364 = vpop.f32.mrf.mxu0
        %1365 = vmatprep.mubr.f32.mxu0 %v1130
        %1366 = vmatmul.mubr.f32.gmra.mxu0 %v1129
        %v1367 = vpop.f32.mrf.mxu0
        %v1368 = vadd.f32 0.0, %v1367
        %v1369 = vpop.f32.mrf.mxu0
        %1370 = vmatprep.mubr.f32.mxu0 %v1134
        %1371 = vmatmul.mubr.f32.gmra.mxu0 %v1133
        %v1372 = vpop.f32.mrf.mxu0
        %v1373 = vadd.f32 0.0, %v1372
        %v1374 = vpop.f32.mrf.mxu0
        %1375 = vmatprep.mubr.f32.mxu0 %v1138
        %1376 = vmatmul.mubr.f32.gmra.mxu0 %v1137
        %v1377 = vpop.f32.mrf.mxu0
        %v1378 = vadd.f32 0.0, %v1377
        %v1379 = vpop.f32.mrf.mxu0
        %1380 = vdwg.mxu0
        %1381 = vmatprep.subr.mxu0 0.0
        %1382 = vmatpush1.msra.mxu0 %v1235
        %1383 = vmatprep.subr.mxu0 0.0
        %1384 = vmatpush1.msra.mxu0 %v1234
        %1385 = vmatprep.subr.mxu0 0.0
        %1386 = vmatpush1.msra.mxu0 %v1233
        %1387 = vmatprep.subr.mxu0 0.0
        %1388 = vmatpush1.msra.mxu0 %v1232
        %1389 = vmatprep.subr.mxu0 0.0
        %1390 = vmatpush1.msra.mxu0 %v1231
        %1391 = vmatprep.subr.mxu0 0.0
        %1392 = vmatpush1.msra.mxu0 %v1230
        %1393 = vmatprep.subr.mxu0 0.0
        %1394 = vmatpush1.msra.mxu0 %v1229
        %1395 = vmatprep.subr.mxu0 0.0
        %1396 = vmatpush1.msra.mxu0 %v1228
        %1397 = vmatprep.subr.mxu0 0.0
        %1398 = vmatpush1.msra.mxu0 %v1227
        %1399 = vmatprep.subr.mxu0 0.0
        %1400 = vmatpush1.msra.mxu0 %v1226
        %1401 = vmatprep.subr.mxu0 0.0
        %1402 = vmatpush1.msra.mxu0 %v1225
        %1403 = vmatprep.subr.mxu0 0.0
        %1404 = vmatpush1.msra.mxu0 %v1224
        %1405 = vmatprep.subr.mxu0 0.0
        %1406 = vmatpush1.msra.mxu0 %v1223
        %1407 = vmatprep.subr.mxu0 0.0
        %1408 = vmatpush1.msra.mxu0 %v1222
        %1409 = vmatprep.subr.mxu0 0.0
        %1410 = vmatpush1.msra.mxu0 %v1221
        %1411 = vmatprep.subr.mxu0 0.0
        %1412 = vmatpush1.msra.mxu0 %v1220
        %1413 = vmatprep.subr.mxu0 0.0
        %1414 = vmatpush2.msra.mxu0 0.0
        %1415 = vmatprep.subr.mxu0 0.0
        %1416 = vmatpush2.msra.mxu0 0.0
        %1417 = vmatprep.subr.mxu0 0.0
        %1418 = vmatpush2.msra.mxu0 0.0
        %1419 = vmatprep.subr.mxu0 0.0
        %1420 = vmatpush2.msra.mxu0 0.0
        %1421 = vmatprep.subr.mxu0 0.0
        %1422 = vmatpush2.msra.mxu0 0.0
        %1423 = vmatprep.subr.mxu0 0.0
        %1424 = vmatpush2.msra.mxu0 0.0
        %1425 = vmatprep.subr.mxu0 0.0
        %1426 = vmatpush2.msra.mxu0 0.0
        %1427 = vmatprep.subr.mxu0 0.0
        %1428 = vmatpush2.msra.mxu0 0.0
        %1429 = vmatprep.subr.mxu0 0.0
        %1430 = vmatpush2.msra.mxu0 0.0
        %1431 = vmatprep.subr.mxu0 0.0
        %1432 = vmatpush2.msra.mxu0 0.0
        %1433 = vmatprep.subr.mxu0 0.0
        %1434 = vmatpush2.msra.mxu0 0.0
        %1435 = vmatprep.subr.mxu0 0.0
        %1436 = vmatpush2.msra.mxu0 0.0
        %1437 = vmatprep.subr.mxu0 0.0
        %1438 = vmatpush2.msra.mxu0 0.0
        %1439 = vmatprep.subr.mxu0 0.0
        %1440 = vmatpush2.msra.mxu0 0.0
        %1441 = vmatprep.subr.mxu0 0.0
        %1442 = vmatpush2.msra.mxu0 0.0
        %1443 = vmatprep.subr.mxu0 0.0
        %1444 = vmatpush2.msra.mxu0 0.0
        %1445 = vmatprep.mubr.f32.mxu0 0.0
        %1446 = vmatmul.mubr.f32.gmra.mxu0 %v1079
        %v1447 = vpop.f32.mrf.mxu0
        %v1448 = vadd.f32 %v1303, %v1447
        %v1449 = vpop.f32.mrf.mxu0
        %1450 = vmatprep.mubr.f32.mxu0 0.0
        %1451 = vmatmul.mubr.f32.gmra.mxu0 %v1083
        %v1452 = vpop.f32.mrf.mxu0
        %v1453 = vadd.f32 %v1308, %v1452
        %v1454 = vpop.f32.mrf.mxu0
        %1455 = vmatprep.mubr.f32.mxu0 0.0
        %1456 = vmatmul.mubr.f32.gmra.mxu0 %v1087
        %v1457 = vpop.f32.mrf.mxu0
        %v1458 = vadd.f32 %v1313, %v1457
        %v1459 = vpop.f32.mrf.mxu0
        %1460 = vmatprep.mubr.f32.mxu0 0.0
        %1461 = vmatmul.mubr.f32.gmra.mxu0 %v1091
        %v1462 = vpop.f32.mrf.mxu0
        %v1463 = vadd.f32 %v1318, %v1462
        %v1464 = vpop.f32.mrf.mxu0
        %1465 = vmatprep.mubr.f32.mxu0 0.0
        %1466 = vmatmul.mubr.f32.gmra.mxu0 %v1095
        %v1467 = vpop.f32.mrf.mxu0
        %v1468 = vadd.f32 %v1323, %v1467
        %v1469 = vpop.f32.mrf.mxu0
        %1470 = vmatprep.mubr.f32.mxu0 0.0
        %1471 = vmatmul.mubr.f32.gmra.mxu0 %v1099
        %v1472 = vpop.f32.mrf.mxu0
        %v1473 = vadd.f32 %v1328, %v1472
        %v1474 = vpop.f32.mrf.mxu0
        %1475 = vmatprep.mubr.f32.mxu0 0.0
        %1476 = vmatmul.mubr.f32.gmra.mxu0 %v1103
        %v1477 = vpop.f32.mrf.mxu0
        %v1478 = vadd.f32 %v1333, %v1477
        %v1479 = vpop.f32.mrf.mxu0
        %1480 = vmatprep.mubr.f32.mxu0 0.0
        %1481 = vmatmul.mubr.f32.gmra.mxu0 %v1107
        %v1482 = vpop.f32.mrf.mxu0
        %v1483 = vadd.f32 %v1338, %v1482
        %v1484 = vpop.f32.mrf.mxu0
        %1485 = vmatprep.mubr.f32.mxu0 0.0
        %1486 = vmatmul.mubr.f32.gmra.mxu0 %v1111
        %v1487 = vpop.f32.mrf.mxu0
        %v1488 = vadd.f32 %v1343, %v1487
        %v1489 = vpop.f32.mrf.mxu0
        %1490 = vmatprep.mubr.f32.mxu0 0.0
        %1491 = vmatmul.mubr.f32.gmra.mxu0 %v1115
        %v1492 = vpop.f32.mrf.mxu0
        %v1493 = vadd.f32 %v1348, %v1492
        %v1494 = vpop.f32.mrf.mxu0
        %1495 = vmatprep.mubr.f32.mxu0 0.0
        %1496 = vmatmul.mubr.f32.gmra.mxu0 %v1119
        %v1497 = vpop.f32.mrf.mxu0
        %v1498 = vadd.f32 %v1353, %v1497
        %v1499 = vpop.f32.mrf.mxu0
        %1500 = vmatprep.mubr.f32.mxu0 0.0
        %1501 = vmatmul.mubr.f32.gmra.mxu0 %v1123
        %v1502 = vpop.f32.mrf.mxu0
        %v1503 = vadd.f32 %v1358, %v1502
        %v1504 = vpop.f32.mrf.mxu0
        %1505 = vmatprep.mubr.f32.mxu0 0.0
        %1506 = vmatmul.mubr.f32.gmra.mxu0 %v1127
        %v1507 = vpop.f32.mrf.mxu0
        %v1508 = vadd.f32 %v1363, %v1507
        %v1509 = vpop.f32.mrf.mxu0
        %1510 = vmatprep.mubr.f32.mxu0 0.0
        %1511 = vmatmul.mubr.f32.gmra.mxu0 %v1131
        %v1512 = vpop.f32.mrf.mxu0
        %v1513 = vadd.f32 %v1368, %v1512
        %v1514 = vpop.f32.mrf.mxu0
        %1515 = vmatprep.mubr.f32.mxu0 0.0
        %1516 = vmatmul.mubr.f32.gmra.mxu0 %v1135
        %v1517 = vpop.f32.mrf.mxu0
        %v1518 = vadd.f32 %v1373, %v1517
        %v1519 = vpop.f32.mrf.mxu0
        %1520 = vmatprep.mubr.f32.mxu0 0.0
        %1521 = vmatmul.mubr.f32.gmra.mxu0 %v1139
        %v1522 = vpop.f32.mrf.mxu0
        %v1523 = vadd.f32 %v1378, %v1522
        %v1524 = vpop.f32.mrf.mxu0
        %1525 = vdwg.mxu0
        %s1526 = sld [smem:[#allocation2]]
        %v1527 = vstv %s1526
        %v1528 = vmul.f32 %v1527, %v1448
        %v1529 = vmul.f32 %v1527, %v1453
        %v1530 = vmul.f32 %v1527, %v1458
        %v1531 = vmul.f32 %v1527, %v1463
        %v1532 = vmul.f32 %v1527, %v1468
        %v1533 = vmul.f32 %v1527, %v1473
        %v1534 = vmul.f32 %v1527, %v1478
        %v1535 = vmul.f32 %v1527, %v1483
        %v1536 = vmul.f32 %v1527, %v1488
        %v1537 = vmul.f32 %v1527, %v1493
        %v1538 = vmul.f32 %v1527, %v1498
        %v1539 = vmul.f32 %v1527, %v1503
        %v1540 = vmul.f32 %v1527, %v1508
        %v1541 = vmul.f32 %v1527, %v1513
        %v1542 = vmul.f32 %v1527, %v1518
        %v1543 = vmul.f32 %v1527, %v1523
        %v1544 = vld [vmem:[%s385] sm:$0xff]
        %v1545 = vld [vmem:[%s385 + $0x8] sm:$0xff]
        %v1546 = vld [vmem:[%s385 + $0x10] sm:$0xff]
        %v1547 = vld [vmem:[%s385 + $0x18] sm:$0xff]
        %v1548 = vld [vmem:[%s385 + $0x20] sm:$0xff]
        %v1549 = vld [vmem:[%s385 + $0x28] sm:$0xff]
        %v1550 = vld [vmem:[%s385 + $0x30] sm:$0xff]
        %v1551 = vld [vmem:[%s385 + $0x38] sm:$0xff]
        %v1552 = vld [vmem:[%s385 + $0x40] sm:$0xff]
        %v1553 = vld [vmem:[%s385 + $0x48] sm:$0xff]
        %v1554 = vld [vmem:[%s385 + $0x50] sm:$0xff]
        %v1555 = vld [vmem:[%s385 + $0x58] sm:$0xff]
        %v1556 = vld [vmem:[%s385 + $0x60] sm:$0xff]
        %v1557 = vld [vmem:[%s385 + $0x68] sm:$0xff]
        %v1558 = vld [vmem:[%s385 + $0x70] sm:$0xff]
        %v1559 = vld [vmem:[%s385 + $0x78] sm:$0xff]
        %v1560 = vadd.f32 %v1528, %v1544
        %v1561 = vadd.f32 %v1529, %v1545
        %v1562 = vadd.f32 %v1530, %v1546
        %v1563 = vadd.f32 %v1531, %v1547
        %v1564 = vadd.f32 %v1532, %v1548
        %v1565 = vadd.f32 %v1533, %v1549
        %v1566 = vadd.f32 %v1534, %v1550
        %v1567 = vadd.f32 %v1535, %v1551
        %v1568 = vadd.f32 %v1536, %v1552
        %v1569 = vadd.f32 %v1537, %v1553
        %v1570 = vadd.f32 %v1538, %v1554
        %v1571 = vadd.f32 %v1539, %v1555
        %v1572 = vadd.f32 %v1540, %v1556
        %v1573 = vadd.f32 %v1541, %v1557
        %v1574 = vadd.f32 %v1542, %v1558
        %v1575 = vadd.f32 %v1543, %v1559
        %1576 = vst [vmem:[%s422] sm:$0xff] %v1560
        %1577 = vst [vmem:[%s422 + $0x8] sm:$0xff] %v1561
        %1578 = vst [vmem:[%s422 + $0x10] sm:$0xff] %v1562
        %1579 = vst [vmem:[%s422 + $0x18] sm:$0xff] %v1563
        %1580 = vst [vmem:[%s422 + $0x20] sm:$0xff] %v1564
        %1581 = vst [vmem:[%s422 + $0x28] sm:$0xff] %v1565
        %1582 = vst [vmem:[%s422 + $0x30] sm:$0xff] %v1566
        %1583 = vst [vmem:[%s422 + $0x38] sm:$0xff] %v1567
        %1584 = vst [vmem:[%s422 + $0x40] sm:$0xff] %v1568
        %1585 = vst [vmem:[%s422 + $0x48] sm:$0xff] %v1569
        %1586 = vst [vmem:[%s422 + $0x50] sm:$0xff] %v1570
        %1587 = vst [vmem:[%s422 + $0x58] sm:$0xff] %v1571
        %1588 = vst [vmem:[%s422 + $0x60] sm:$0xff] %v1572
        %1589 = vst [vmem:[%s422 + $0x68] sm:$0xff] %v1573
        %1590 = vst [vmem:[%s422 + $0x70] sm:$0xff] %v1574
        %1591 = vst [vmem:[%s422 + $0x78] sm:$0xff] %v1575
        %s1592 = sand.u32 %s205, 1
        %s1593 = scalar_lea.sflag [#allocation5], %s1592
        %s1594 = sand.u32 %s205, 1
        %s1595 = smul.addr %s1594, 128
        %s1596 = scalar_lea.vmem [#allocation12], %s1595
        %s1597 = sand.u32 %s233, 1
        %s1598 = scalar_lea.sflag [#allocation14], %s1597
        %s1599 = sand.u32 %s233, 1
        %s1600 = smul.addr %s1599, 384
        %s1601 = scalar_lea.vmem [#allocation13], %s1600
        // Predicated region
        $region65: #{tpu_custom_call.1} parent=43 // pred_check
          %p1602 = pneg %p215
        $region66: #{tpu_custom_call.1} parent=43 // pred_check_branch
          %1604 = sbr.rel (%p1602) target = $region68
        $region67: #{tpu_custom_call.1} parent=43 // pred_region
          %s1605 = smul.u32 16, %s38
          %s1607 = ssub.s32 2048, 2048
          %1608 = vsyncadd %s1593, %s1607
          %s1609 = smul.addr %s37, 48
          %s1610 = sadd.s32 %s1605, %s1609
          %s1611 = smul.addr %s1610, 128
          %s1612 = scalar_lea.hbm %s6, %s1611
          %s1613 = sshll.u32 %s1596, 4
          %s1614 = int_to_ptr.vmem [resolvable:$true] %s1613
          %1619 = dma.vmem_to_hbm [thread:$0]  %s1614, 2048, %s1612, %s1593, 128, 128, 8
        $region68: #{tpu_custom_call.1} parent=43 // pred_fallthru
          _
        // Predicated region
        $region69: #{tpu_custom_call.1} parent=43 // pred_check
          %p1620 = pneg %p243
        $region70: #{tpu_custom_call.1} parent=43 // pred_check_branch
          %1622 = sbr.rel (%p1620) target = $region72
        $region71: #{tpu_custom_call.1} parent=43 // pred_region
          %s1623 = smul.u32 16, %s38
          %s1625 = ssub.s32 6144, 6144
          %1626 = vsyncadd %s1598, %s1625
          %s1627 = smul.addr %s1623, 3
          %s1628 = smul.addr %s37, 144
          %s1629 = sadd.s32 %s1627, %s1628
          %s1630 = smul.addr %s1629, 128
          %s1631 = scalar_lea.hbm %s7, %s1630
          %s1632 = sshll.u32 %s1601, 4
          %s1633 = int_to_ptr.vmem [resolvable:$true] %s1632
          %1638 = dma.vmem_to_hbm [thread:$0]  %s1633, 6144, %s1631, %s1598, 384, 384, 24
        $region72: #{tpu_custom_call.1} parent=43 // pred_fallthru
          _
      $region44: #{tpu_custom_call.1} parent=5 // pred_fallthru
        _
      %p1639 = scmp.le.s32.totalorder 2, %s28
      // Predicated region
      $region73: #{tpu_custom_call.1} parent=5 // pred_check
        %p1640 = pneg %p1639
      $region74: #{tpu_custom_call.1} parent=5 // pred_check_branch
        %1642 = sbr.rel (%p1640) target = $region76
      $region75: #{tpu_custom_call.1} parent=5 // pred_region
        %s1643 = ssub.s32 %s28, 2
        // Predicated region
        $region77: #{tpu_custom_call.1} parent=75 // pred_check
          %p1644 = pneg %p221
        $region78: #{tpu_custom_call.1} parent=75 // pred_check_branch
          %1646 = sbr.rel (%p1644) target = $region80
        $region79: #{tpu_custom_call.1} parent=75 // pred_region
          %s1647 = sand.u32 %s206, 1
          %s1648 = scalar_lea.sflag [#allocation5], %s1647
          %s1649 = sand.u32 %s206, 1
          %s1650 = smul.addr %s1649, 128
          %s1651 = scalar_lea.vmem [#allocation12], %s1650
          %1652 = dma.done %s1648, 2048
        $region80: #{tpu_custom_call.1} parent=75 // pred_fallthru
          _
        // Predicated region
        $region81: #{tpu_custom_call.1} parent=75 // pred_check
          %p1653 = pneg %p249
        $region82: #{tpu_custom_call.1} parent=75 // pred_check_branch
          %1655 = sbr.rel (%p1653) target = $region84
        $region83: #{tpu_custom_call.1} parent=75 // pred_region
          %s1656 = sand.u32 %s234, 1
          %s1657 = scalar_lea.sflag [#allocation14], %s1656
          %s1658 = sand.u32 %s234, 1
          %s1659 = smul.addr %s1658, 384
          %s1660 = scalar_lea.vmem [#allocation13], %s1659
          %1661 = dma.done %s1657, 6144
        $region84: #{tpu_custom_call.1} parent=75 // pred_fallthru
          _
      $region76: #{tpu_custom_call.1} parent=5 // pred_fallthru
        _
    $region6: #{tpu_custom_call.1} parent=1 // loop_footer
      %s32 = sadd.s32 1, %s28
    $region7: #{tpu_custom_call.1} parent=1 // loop_footer_branch
      %27 = sbr.rel target = $region3
    $region8: #{tpu_custom_call.1} parent=1 // loop_exit
      _
    %1662 = vsyncpa [#allocation4], 1
    %s1663 = scalar_lea.sflag [#allocation4], 1
    %1664 = vsyncpa %s1663, 1
    %1665 = vsyncpa [#allocation7], 1
    %1666 = vsyncpa [#allocation10], 1
    %s1667 = scalar_lea.sflag [#allocation10], 1
    %1668 = vsyncpa %s1667, 1
    %1669 = vsyncpa [#allocation5], 1
    %s1670 = scalar_lea.sflag [#allocation5], 1
    %1671 = vsyncpa %s1670, 1
    %1672 = vsyncpa [#allocation14], 1
    %s1673 = scalar_lea.sflag [#allocation14], 1
    %1674 = vsyncpa %s1673, 1

</llo_original>
